<compile_context>
chip_gen: v5e
topology: v5e:2x2
jax: 0.10.0
libtpu: 0.0.40
codegen_flags: <defaults>
</compile_context>

<pallas_src>
import functools

import jax
import jax.numpy as jnp
import numpy as np
from jax.experimental import pallas as pl
from jax.experimental.pallas import tpu as pltpu


def conv_pool_gate_kernel(fsp_ref, fcp_ref, w_ref, scale_ref, bias_ref,
                          w1_ref, w2_ref, gate_ref, sum_scr, *, inv_hw):
    """Pass 1: feat = relu(bn(conv1x1([fsp;fcp]))) per HW tile, accumulate the
    spatial sum in VMEM, and at the last tile emit the per-batch SE gate
    g = sigmoid(w2 @ relu(w1 @ mean)) + 1 (residual folded in)."""
    t = pl.program_id(1)

    # Single K=Cs+Cc contraction: concat the two channel groups in VMEM,
    # bf16 MXU operands, f32 accumulation.
    x = jnp.concatenate([fsp_ref[0].astype(jnp.bfloat16),
                         fcp_ref[0].astype(jnp.bfloat16)], axis=0)    # (Cin, T)
    acc = jnp.dot(w_ref[...], x, preferred_element_type=jnp.float32)  # (Cout, T)

    # Folded BatchNorm (eval) + ReLU, f32 on the VPU; (Cout,1) broadcasts on lanes.
    feat = jnp.maximum(acc * scale_ref[...] + bias_ref[...], 0.0)
    tile_sum = jnp.sum(feat, axis=-1, keepdims=True)                  # (Cout, 1)

    @pl.when(t == 0)
    def _():
        sum_scr[...] = tile_sum          # direct store, no zero-init round trip

    @pl.when(t > 0)
    def _():
        sum_scr[...] = sum_scr[...] + tile_sum

    @pl.when(t == pl.num_programs(1) - 1)
    def _():
        mean = sum_scr[...] * inv_hw                                  # (Cout, 1)
        a = jnp.dot(w1_ref[...], mean, preferred_element_type=jnp.float32)
        a = jnp.maximum(a, 0.0)
        a = jnp.dot(w2_ref[...], a, preferred_element_type=jnp.float32)
        gate_ref[0] = jax.nn.sigmoid(a) + 1.0    # feat*atten + feat == feat*(atten+1)


def conv_scale_kernel(gate_ref, fsp_ref, fcp_ref, w_ref, scale_ref, bias_ref,
                      out_ref):
    """Pass 2: recompute feat for one HW tile and scale by the per-batch gate."""
    x = jnp.concatenate([fsp_ref[0].astype(jnp.bfloat16),
                         fcp_ref[0].astype(jnp.bfloat16)], axis=0)
    acc = jnp.dot(w_ref[...], x, preferred_element_type=jnp.float32)
    feat = jnp.maximum(acc * scale_ref[...] + bias_ref[...], 0.0)
    out_ref[0] = (feat * gate_ref[0]).astype(out_ref.dtype)


def _vmem_capacity_bytes():
    try:
        return int(pltpu.get_tpu_info().vmem_capacity_bytes)
    except Exception:
        return 128 << 20   # conservative v5e/v6e default


def _pick_hw_tile(hw, max_tile):
    """Largest divisor of hw <= max_tile, preferring lane-dense (128k) tiles."""
    max_tile = max(1, min(max_tile, hw))
    fallback = None
    for t in range(max_tile, 0, -1):
        if hw % t:
            continue
        if t % 128 == 0:
            return t
        if fallback is None and (t % 8 == 0 or t == hw):
            fallback = t
    return fallback if fallback is not None else hw


def _est_vmem_bytes(T, cin, cout, c4, in_bytes, out_bytes):
    tiles = 2 * T * cin * in_bytes + 2 * T * cout * out_bytes   # double-buffered I/O
    temps = T * cin * 2 + 2 * T * cout * 4                      # bf16 concat + f32 acc/feat
    weights = 2 * (cin * cout * 2 + 2 * cout * 4
                   + c4 * cout * 4 + cout * c4 * 4 + cout * 4)
    return tiles + temps + weights + (2 << 20)


def feature_fusion_module(fsp, fcp, params, *, max_hw_tile=2048):
    """fsp: (N, Cs, H, W), fcp: (N, Cc, H, W) -> (N, out_chan, H, W)."""
    w, scale, bias, w1, w2 = params
    N, Cs, H, W = fsp.shape
    Cc = fcp.shape[1]
    Cin = Cs + Cc
    Cout = w.shape[0]
    C4 = w1.shape[0]
    HW = H * W
    out_dtype = fsp.dtype
    in_bytes = jnp.dtype(fsp.dtype).itemsize
    out_bytes = jnp.dtype(out_dtype).itemsize

    # Per-generation VMEM clamp (64 MiB on v7x, 128 MiB on v5e/v6e).
    budget = int(0.7 * _vmem_capacity_bytes())
    T = _pick_hw_tile(HW, max_hw_tile)
    while T > 8 and _est_vmem_bytes(T, Cin, Cout, C4, in_bytes, out_bytes) > budget:
        nT = _pick_hw_tile(HW, T - 1)
        if nT >= T:
            break
        T = nT
    nt = HW // T
    est = _est_vmem_bytes(T, Cin, Cout, C4, in_bytes, out_bytes)
    vmem_limit = int(min(max(2 * est, 16 << 20), budget))

    # NCHW-native: free reshapes only, no transposes.
    fsp_flat = fsp.reshape(N, Cs, HW)
    fcp_flat = fcp.reshape(N, Cc, HW)

    w_spec = pl.BlockSpec((Cout, Cin), lambda n, t: (0, 0))
    cvec_spec = pl.BlockSpec((Cout, 1), lambda n, t: (0, 0))
    fsp_spec = pl.BlockSpec((1, Cs, T), lambda n, t: (n, 0, t))
    fcp_spec = pl.BlockSpec((1, Cc, T), lambda n, t: (n, 0, t))
    gate_spec = pl.BlockSpec((1, Cout, 1), lambda n, t: (n, 0, 0))

    # Pass 1: conv + folded-BN + ReLU + spatial-sum accumulator -> per-batch gate.
    gate = pl.pallas_call(
        functools.partial(conv_pool_gate_kernel, inv_hw=1.0 / HW),
        out_shape=jax.ShapeDtypeStruct((N, Cout, 1), jnp.float32),
        grid_spec=pltpu.PrefetchScalarGridSpec(
            num_scalar_prefetch=0,
            grid=(N, nt),
            in_specs=[
                fsp_spec, fcp_spec, w_spec, cvec_spec, cvec_spec,
                pl.BlockSpec((C4, Cout), lambda n, t: (0, 0)),
                pl.BlockSpec((Cout, C4), lambda n, t: (0, 0)),
            ],
            out_specs=gate_spec,
            scratch_shapes=[pltpu.VMEM((Cout, 1), jnp.float32)],
        ),
        compiler_params=pltpu.CompilerParams(
            dimension_semantics=("parallel", "arbitrary"),
            vmem_limit_bytes=vmem_limit),
    )(fsp_flat, fcp_flat, w, scale, bias, w1, w2)

    # Pass 2: recompute conv + BN + ReLU per tile, scale by the gate (all parallel).
    out_flat = pl.pallas_call(
        conv_scale_kernel,
        out_shape=jax.ShapeDtypeStruct((N, Cout, HW), out_dtype),
        grid_spec=pltpu.PrefetchScalarGridSpec(
            num_scalar_prefetch=0,
            grid=(N, nt),
            in_specs=[gate_spec, fsp_spec, fcp_spec, w_spec, cvec_spec, cvec_spec],
            out_specs=pl.BlockSpec((1, Cout, T), lambda n, t: (n, 0, t)),
        ),
        compiler_params=pltpu.CompilerParams(
            dimension_semantics=("parallel", "parallel"),
            vmem_limit_bytes=vmem_limit),
    )(gate, fsp_flat, fcp_flat, w, scale, bias)

    return out_flat.reshape(N, Cout, H, W)


def make_params(key, in_chan, out_chan):
    """Deterministic synthetic parameters matching the module's shapes."""
    k0, k1, k2, k3, k4 = jax.random.split(key, 5)
    # kaiming_normal_(a=1): std = 1/sqrt(fan_in); conv weight layout (Cout, Cin).
    w = jax.random.normal(k0, (out_chan, in_chan), jnp.float32) / np.sqrt(in_chan)
    w1 = jax.random.normal(k1, (out_chan // 4, out_chan), jnp.float32) / np.sqrt(out_chan)
    w2 = jax.random.normal(k2, (out_chan, out_chan // 4), jnp.float32) / np.sqrt(out_chan // 4)
    # BatchNorm2d (eval): folded running stats -> scale/bias, shaped (Cout, 1).
    gamma = 1.0 + 0.1 * jax.random.normal(k3, (out_chan,), jnp.float32)
    beta = 0.1 * jax.random.normal(k4, (out_chan,), jnp.float32)
    running_mean = jnp.zeros((out_chan,), jnp.float32)
    running_var = jnp.ones((out_chan,), jnp.float32)
    eps = 1e-5
    scale = gamma / jnp.sqrt(running_var + eps)
    bias = beta - running_mean * scale
    return (w.astype(jnp.bfloat16),              # bf16 MXU operand
            scale.reshape(out_chan, 1), bias.reshape(out_chan, 1), w1, w2)


def feature_fusion_ref(fsp, fcp, params):
    """Pure-JAX reference (same math / same bf16 operand dtypes), no Pallas."""
    w, scale, bias, w1, w2 = params
    N, Cs, H, W = fsp.shape
    Cout = w.shape[0]
    x = jnp.concatenate([fsp, fcp], axis=1).reshape(N, -1, H * W).astype(jnp.bfloat16)
    acc = jnp.einsum('oc,ncp->nop', w, x, preferred_element_type=jnp.float32)
    feat = jnp.maximum(acc * scale[None] + bias[None], 0.0)
    mean = jnp.mean(feat, axis=-1, keepdims=True)                       # (N, Cout, 1)
    a = jnp.maximum(jnp.einsum('dc,ncx->ndx', w1, mean), 0.0)
    g = jax.nn.sigmoid(jnp.einsum('cd,ndx->ncx', w2, a)) + 1.0
    out = feat * g
    return out.reshape(N, Cout, H, W).astype(fsp.dtype)


if __name__ == "__main__":
    key = jax.random.PRNGKey(0)
    k_fsp, k_fcp, k_par = jax.random.split(key, 3)

    # fsp/fcp each (2, 64, 16, 16) -> in_chan = 128, out_chan = 128
    # (lane/sublane-dense channel counts; HW = 256).
    N, Cs, H, W = 2, 64, 16, 16
    in_chan, out_chan = 2 * Cs, 128

    # bf16 activations produced at the source (halves input DMA bytes).
    fsp = jax.random.normal(k_fsp, (N, Cs, H, W), jnp.float32).astype(jnp.bfloat16)
    fcp = jax.random.normal(k_fcp, (N, Cs, H, W), jnp.float32).astype(jnp.bfloat16)
    params = make_params(k_par, in_chan, out_chan)

    # max_hw_tile=128 -> 2 spatial tiles per batch element (exercises the
    # pooled-sum accumulation + last-tile gate path; real shapes use 1024+).
    out = feature_fusion_module(fsp, fcp, params, max_hw_tile=128)
    out = jax.block_until_ready(out)

    ref = jax.block_until_ready(feature_fusion_ref(fsp, fcp, params))
    assert out.shape == (N, out_chan, H, W), out.shape
    np.testing.assert_allclose(np.asarray(out, np.float32),
                               np.asarray(ref, np.float32),
                               rtol=2e-2, atol=2e-2)

    print("KERNEL_OK")
</pallas_src>

<mosaic_0001>
module attributes {stable_mosaic.version = 11 : i64} {
  func.func @conv_pool_gate_kernel(%arg0: i32, %arg1: i32, %arg2: memref<1x64x128xbf16, #tpu.memory_space<vmem>>, %arg3: memref<1x64x128xbf16, #tpu.memory_space<vmem>>, %arg4: memref<128x128xbf16, #tpu.memory_space<vmem>>, %arg5: memref<128x1xf32, #tpu.memory_space<vmem>>, %arg6: memref<128x1xf32, #tpu.memory_space<vmem>>, %arg7: memref<32x128xf32, #tpu.memory_space<vmem>>, %arg8: memref<128x32xf32, #tpu.memory_space<vmem>>, %arg9: memref<1x128x1xf32, #tpu.memory_space<vmem>>, %arg10: memref<128x1xf32, #tpu.memory_space<vmem>>) attributes {dimension_semantics = [#tpu.dimension_semantics<parallel>, #tpu.dimension_semantics<arbitrary>], iteration_bounds = array<i64: 2, 2>, scalar_prefetch = 0 : i64, scratch_operands = 1 : i64, tpu.core_type = #tpu.core_type<tc>, window_params = [{transform_indices = @transform_0, window_bounds = array<i64: 1, 64, 128>}, {transform_indices = @transform_1, window_bounds = array<i64: 1, 64, 128>}, {pipeline_mode = #tpu.pipeline_mode<synchronous>, transform_indices = @transform_2, window_bounds = array<i64: 128, 128>}, {pipeline_mode = #tpu.pipeline_mode<synchronous>, transform_indices = @transform_3, window_bounds = array<i64: 128, 1>}, {pipeline_mode = #tpu.pipeline_mode<synchronous>, transform_indices = @transform_4, window_bounds = array<i64: 128, 1>}, {pipeline_mode = #tpu.pipeline_mode<synchronous>, transform_indices = @transform_5, window_bounds = array<i64: 32, 128>}, {pipeline_mode = #tpu.pipeline_mode<synchronous>, transform_indices = @transform_6, window_bounds = array<i64: 128, 32>}, {transform_indices = @transform_7, window_bounds = array<i64: 1, 128, 1>}]} {
    %c0 = arith.constant 0 : index
    %c0_0 = arith.constant 0 : index
    %c0_1 = arith.constant 0 : index
    %0 = vector.load %arg2[%c0, %c0_0, %c0_1] : memref<1x64x128xbf16, #tpu.memory_space<vmem>>, vector<1x64x128xbf16>
    %1 = vector.shape_cast %0 : vector<1x64x128xbf16> to vector<64x128xbf16>
    %c0_2 = arith.constant 0 : index
    %c0_3 = arith.constant 0 : index
    %c0_4 = arith.constant 0 : index
    %2 = vector.load %arg3[%c0_2, %c0_3, %c0_4] : memref<1x64x128xbf16, #tpu.memory_space<vmem>>, vector<1x64x128xbf16>
    %3 = vector.shape_cast %2 : vector<1x64x128xbf16> to vector<64x128xbf16>
    %4 = tpu.concatenate %1, %3 in 0 : vector<64x128xbf16>, vector<64x128xbf16> -> vector<128x128xbf16>
    %c0_5 = arith.constant 0 : index
    %c0_6 = arith.constant 0 : index
    %5 = vector.load %arg4[%c0_5, %c0_6] : memref<128x128xbf16, #tpu.memory_space<vmem>>, vector<128x128xbf16>
    %cst = arith.constant dense<0.000000e+00> : vector<128x128xf32>
    %6 = tpu.matmul %5, %4, %cst {dimension_numbers = #tpu.dot_dimension_numbers<[1], [0], [0], [1], [0, 0, 1, 1], [], []>} : vector<128x128xbf16>, vector<128x128xbf16>, vector<128x128xf32> -> vector<128x128xf32>
    %c0_7 = arith.constant 0 : index
    %c0_8 = arith.constant 0 : index
    %7 = vector.load %arg5[%c0_7, %c0_8] : memref<128x1xf32, #tpu.memory_space<vmem>>, vector<128x1xf32>
    %8 = vector.broadcast %7 : vector<128x1xf32> to vector<128x128xf32>
    %9 = arith.mulf %6, %8 : vector<128x128xf32>
    %c0_9 = arith.constant 0 : index
    %c0_10 = arith.constant 0 : index
    %10 = vector.load %arg6[%c0_9, %c0_10] : memref<128x1xf32, #tpu.memory_space<vmem>>, vector<128x1xf32>
    %11 = vector.broadcast %10 : vector<128x1xf32> to vector<128x128xf32>
    %12 = arith.addf %9, %11 : vector<128x128xf32>
    %cst_11 = arith.constant 0.000000e+00 : f32
    %13 = vector.broadcast %cst_11 : f32 to vector<128x128xf32>
    %14 = arith.maximumf %12, %13 : vector<128x128xf32>
    %cst_12 = arith.constant dense<0.000000e+00> : vector<128xf32>
    %15 = vector.multi_reduction <add>, %14, %cst_12 [1] : vector<128x128xf32> to vector<128xf32>
    %16 = vector.shape_cast %15 : vector<128xf32> to vector<128x1xf32>
    %c0_i32 = arith.constant 0 : i32
    %17 = arith.cmpi eq, %arg1, %c0_i32 : i32
    %18 = arith.extui %17 : i1 to i32
    %c0_i32_13 = arith.constant 0 : i32
    %19 = arith.cmpi ne, %18, %c0_i32_13 : i32
    scf.if %19 {
      %c0_17 = arith.constant 0 : index
      %c0_18 = arith.constant 0 : index
      %26 = vector.load %arg10[%c0_17, %c0_18] : memref<128x1xf32, #tpu.memory_space<vmem>>, vector<128x1xf32>
      tpu.vector_store %arg10[%c0_17, %c0_18], %16 {strides = array<i32>} : memref<128x1xf32, #tpu.memory_space<vmem>>, vector<128x1xf32>,
    } else {
    }
    %c0_i32_14 = arith.constant 0 : i32
    %20 = arith.cmpi sgt, %arg1, %c0_i32_14 : i32
    %21 = arith.extui %20 : i1 to i32
    %c0_i32_15 = arith.constant 0 : i32
    %22 = arith.cmpi ne, %21, %c0_i32_15 : i32
    scf.if %22 {
      %c0_17 = arith.constant 0 : index
      %c0_18 = arith.constant 0 : index
      %26 = vector.load %arg10[%c0_17, %c0_18] : memref<128x1xf32, #tpu.memory_space<vmem>>, vector<128x1xf32>
      %27 = arith.addf %26, %16 : vector<128x1xf32>
      %c0_19 = arith.constant 0 : index
      %c0_20 = arith.constant 0 : index
      %28 = vector.load %arg10[%c0_19, %c0_20] : memref<128x1xf32, #tpu.memory_space<vmem>>, vector<128x1xf32>
      tpu.vector_store %arg10[%c0_19, %c0_20], %27 {strides = array<i32>} : memref<128x1xf32, #tpu.memory_space<vmem>>, vector<128x1xf32>,
    } else {
    }
    %c1_i32 = arith.constant 1 : i32
    %23 = arith.cmpi eq, %arg1, %c1_i32 : i32
    %24 = arith.extui %23 : i1 to i32
    %c0_i32_16 = arith.constant 0 : i32
    %25 = arith.cmpi ne, %24, %c0_i32_16 : i32
    scf.if %25 {
      %c0_17 = arith.constant 0 : index
      %c0_18 = arith.constant 0 : index
      %26 = vector.load %arg10[%c0_17, %c0_18] : memref<128x1xf32, #tpu.memory_space<vmem>>, vector<128x1xf32>
      %cst_19 = arith.constant 3.906250e-03 : f32
      %27 = vector.broadcast %cst_19 : f32 to vector<128x1xf32>
      %28 = arith.mulf %26, %27 : vector<128x1xf32>
      %c0_20 = arith.constant 0 : index
      %c0_21 = arith.constant 0 : index
      %29 = vector.load %arg7[%c0_20, %c0_21] : memref<32x128xf32, #tpu.memory_space<vmem>>, vector<32x128xf32>
      %cst_22 = arith.constant dense<0.000000e+00> : vector<32x1xf32>
      %30 = tpu.matmul %29, %28, %cst_22 {dimension_numbers = #tpu.dot_dimension_numbers<[1], [0], [0], [1], [0, 0, 1, 1], [], []>} : vector<32x128xf32>, vector<128x1xf32>, vector<32x1xf32> -> vector<32x1xf32>
      %cst_23 = arith.constant 0.000000e+00 : f32
      %31 = vector.broadcast %cst_23 : f32 to vector<32x1xf32>
      %32 = arith.maximumf %30, %31 : vector<32x1xf32>
      %c0_24 = arith.constant 0 : index
      %c0_25 = arith.constant 0 : index
      %33 = vector.load %arg8[%c0_24, %c0_25] : memref<128x32xf32, #tpu.memory_space<vmem>>, vector<128x32xf32>
      %cst_26 = arith.constant dense<0.000000e+00> : vector<128x1xf32>
      %34 = tpu.matmul %33, %32, %cst_26 {dimension_numbers = #tpu.dot_dimension_numbers<[1], [0], [0], [1], [0, 0, 1, 1], [], []>} : vector<128x32xf32>, vector<32x1xf32>, vector<128x1xf32> -> vector<128x1xf32>
      %35 = arith.negf %34 : vector<128x1xf32>
      %36 = math.exp %35 : vector<128x1xf32>
      %cst_27 = arith.constant 1.000000e+00 : f32
      %37 = vector.broadcast %cst_27 : f32 to vector<128x1xf32>
      %38 = arith.addf %37, %36 : vector<128x1xf32>
      %39 = arith.divf %37, %38 : vector<128x1xf32>
      %cst_28 = arith.constant 1.000000e+00 : f32
      %40 = vector.broadcast %cst_28 : f32 to vector<128x1xf32>
      %41 = arith.addf %39, %40 : vector<128x1xf32>
      %c0_29 = arith.constant 0 : index
      %c0_30 = arith.constant 0 : index
      %c0_31 = arith.constant 0 : index
      %42 = vector.load %arg9[%c0_29, %c0_30, %c0_31] : memref<1x128x1xf32, #tpu.memory_space<vmem>>, vector<1x128x1xf32>
      %43 = vector.shape_cast %42 : vector<1x128x1xf32> to vector<128x1xf32>
      %44 = vector.shape_cast %41 : vector<128x1xf32> to vector<1x128x1xf32>
      tpu.vector_store %arg9[%c0_29, %c0_30, %c0_31], %44 {strides = array<i32>} : memref<1x128x1xf32, #tpu.memory_space<vmem>>, vector<1x128x1xf32>,
    } else {
    }
    return
  }
  func.func @transform_0(%arg0: i32, %arg1: i32) -> (i32, i32, i32) {
    %c0_i32 = arith.constant 0 : i32
    %c0_i32_0 = arith.constant 0 : i32
    return %arg0, %c0_i32, %arg1 : i32, i32, i32
  }
  func.func @transform_1(%arg0: i32, %arg1: i32) -> (i32, i32, i32) {
    %c0_i32 = arith.constant 0 : i32
    %c0_i32_0 = arith.constant 0 : i32
    return %arg0, %c0_i32, %arg1 : i32, i32, i32
  }
  func.func @transform_2(%arg0: i32, %arg1: i32) -> (i32, i32) {
    %c0_i32 = arith.constant 0 : i32
    %c0_i32_0 = arith.constant 0 : i32
    %c0_i32_1 = arith.constant 0 : i32
    return %c0_i32, %c0_i32_0 : i32, i32
  }
  func.func @transform_3(%arg0: i32, %arg1: i32) -> (i32, i32) {
    %c0_i32 = arith.constant 0 : i32
    %c0_i32_0 = arith.constant 0 : i32
    %c0_i32_1 = arith.constant 0 : i32
    return %c0_i32, %c0_i32_0 : i32, i32
  }
  func.func @transform_4(%arg0: i32, %arg1: i32) -> (i32, i32) {
    %c0_i32 = arith.constant 0 : i32
    %c0_i32_0 = arith.constant 0 : i32
    %c0_i32_1 = arith.constant 0 : i32
    return %c0_i32, %c0_i32_0 : i32, i32
  }
  func.func @transform_5(%arg0: i32, %arg1: i32) -> (i32, i32) {
    %c0_i32 = arith.constant 0 : i32
    %c0_i32_0 = arith.constant 0 : i32
    %c0_i32_1 = arith.constant 0 : i32
    return %c0_i32, %c0_i32_0 : i32, i32
  }
  func.func @transform_6(%arg0: i32, %arg1: i32) -> (i32, i32) {
    %c0_i32 = arith.constant 0 : i32
    %c0_i32_0 = arith.constant 0 : i32
    %c0_i32_1 = arith.constant 0 : i32
    return %c0_i32, %c0_i32_0 : i32, i32
  }
  func.func @transform_7(%arg0: i32, %arg1: i32) -> (i32, i32, i32) {
    %c0_i32 = arith.constant 0 : i32
    %c0_i32_0 = arith.constant 0 : i32
    %c0_i32_1 = arith.constant 0 : i32
    return %arg0, %c0_i32, %c0_i32_0 : i32, i32, i32
  }
}

</mosaic_0001>

<llo_original>
// kernel: tpu_custom_call.1
$region0: #{tpu_custom_call.1}
  #allocation0 [shape = 'u32[]', space=smem, size = 0x4, offset = 0x4, fixed_abs, tag = 'smem constant byte address 0x4 - core index']
  #allocation1 [shape = 'u32[72,128]{1,0:T(1,128)}', space=vmem, size = 0x9000, scoped, tag = 'internal scratch']
  #allocation2 [shape = 'f32[128,1]{1,0:T(8,128)}', space=vmem, size = 0x10000, scoped, tag = 'scratch operand']
  %s0 = inlined_call_operand.vmem [shape: bf16[2,64,256], index: 0, kind: input, shape index: {}]
  %s1 = inlined_call_operand.vmem [shape: bf16[2,64,256], index: 1, kind: input, shape index: {}]
  %s2 = inlined_call_operand.vmem [shape: bf16[128,128], index: 2, kind: input, shape index: {}]
  %s3 = inlined_call_operand.vmem [shape: f32[128,1], index: 3, kind: input, shape index: {}]
  %s4 = inlined_call_operand.vmem [shape: f32[128,1], index: 4, kind: input, shape index: {}]
  %s5 = inlined_call_operand.vmem [shape: f32[32,128], index: 5, kind: input, shape index: {}]
  %s6 = inlined_call_operand.vmem [shape: f32[128,32], index: 6, kind: input, shape index: {}]
  %s7 = inlined_call_operand.vmem [shape: f32[2,128,1], index: 7, kind: output, shape index: {}]
  %s8 = sld [smem:[#allocation0]]
  $region155: #{tpu_custom_call.1} parent=0
    _
  %s10 = ssub.s32 1, %s8
  %s11 = scalar_select 0, %s10, %s8
  $region1: #{tpu_custom_call.1} parent=0
    #allocation3 [shape = 'u8[32768]{0}', space=vmem, size = 0x8000, scoped, tag = 'input window, operand 0']
    #allocation4 [shape = 'u8[32768]{0}', space=vmem, size = 0x8000, scoped, tag = 'input window, operand 1']
    loop: start=0, step=1, limit=6
    $region2: #{tpu_custom_call.1} parent=1 // loop_pre_header
      _
    $region3: #{tpu_custom_call.1} parent=1 // loop_header
      %s13 = sphi 0, %s17
      %p14 = scmp.ge.s32.totalorder %s13, 6
      %s20 = sphi 0, %s32
      %s21 = sphi 0, %s28
      %s22 = sphi 0, %s20
      %s23 = sphi 0, %s21
      %s24 = sphi 0, %s22
      %s25 = sphi 0, %s23
      %s37 = sphi 0, %s39
      %s40 = sphi 0, %s37
      %s41 = sphi 0, %s40
      %s57 = sphi 0, %s41
      %s65 = sphi 0, %s67
      %s68 = sphi 0, %s65
      %s69 = sphi 0, %s68
      %s85 = sphi 0, %s69
      %s89 = sphi 0, %s89
      %s91 = sphi 0, %s89
      %s92 = sphi 0, %s91
      %s106 = sphi 0, %s92
      %s110 = sphi 0, %s110
      %s112 = sphi 0, %s110
      %s113 = sphi 0, %s112
      %s127 = sphi 0, %s113
      %s131 = sphi 0, %s131
      %s133 = sphi 0, %s131
      %s134 = sphi 0, %s133
      %s148 = sphi 0, %s134
      %s152 = sphi 0, %s152
      %s154 = sphi 0, %s152
      %s155 = sphi 0, %s154
      %s169 = sphi 0, %s155
      %s173 = sphi 0, %s173
      %s175 = sphi 0, %s173
      %s176 = sphi 0, %s175
      %s190 = sphi 0, %s176
      %s196 = sphi 0, %s198
      %s199 = sphi 0, %s196
      %s200 = sphi 0, %s199
      %s216 = sphi 0, %s200
    $region4: #{tpu_custom_call.1} parent=1 // loop_header_branch
      %16 = sbr.rel (%p14) target = $region8
    $region5: #{tpu_custom_call.1} parent=1 // loop_body
      %s18 = ssub.s32 %s13, 1
      %s19 = ssub.s32 %s13, 2
      %s26 = sadd.s32 1, %s21
      %p27 = scmp.ge.s32.totalorder %s26, 2
      %s28 = scalar_select %p27, 0, %s26
      %s29 = sadd.s32 1, %s20
      %s30 = scalar_select %p27, %s29, %s20
      %p31 = scmp.ge.s32.totalorder %s30, 2
      %s32 = scalar_select %p31, 0, %s30
      %s33 = ssub.s32 %s20, %s32
      %s34 = ssub.s32 %s21, %s28
      %s35 = sor.u32 %s33, %s34
      %p36 = scmp.eq.s32.totalorder %s35, 0
      %s38 = sadd.s32 %s37, 1
      %s39 = scalar_select %p36, %s37, %s38
      %p42 = pneg %p36
      %p43 = scmp.eq.s32.totalorder %s13, 3
      %p44 = por %p42, %p43
      %p45 = scmp.ne.s32.totalorder %s37, %s40
      %p46 = scmp.eq.s32.totalorder %s13, 0
      %p47 = por %p45, %p46
      %p48 = scmp.ne.s32.totalorder %s37, %s40
      %p49 = scmp.eq.s32.totalorder %s18, 3
      %p50 = por %p48, %p49
      %p51 = scmp.ne.s32.totalorder %s40, %s41
      %p52 = scmp.eq.s32.totalorder %s18, 0
      %p53 = por %p51, %p52
      %p54 = scmp.ne.s32.totalorder %s40, %s41
      %p55 = scmp.eq.s32.totalorder %s19, 3
      %p56 = por %p54, %p55
      %p58 = scmp.ne.s32.totalorder %s41, %s57
      %p59 = scmp.eq.s32.totalorder %s19, 0
      %p60 = por %p58, %p59
      %s61 = ssub.s32 %s20, %s32
      %s62 = ssub.s32 %s21, %s28
      %s63 = sor.u32 %s61, %s62
      %p64 = scmp.eq.s32.totalorder %s63, 0
      %s66 = sadd.s32 %s65, 1
      %s67 = scalar_select %p64, %s65, %s66
      %p70 = pneg %p64
      %p71 = scmp.eq.s32.totalorder %s13, 3
      %p72 = por %p70, %p71
      %p73 = scmp.ne.s32.totalorder %s65, %s68
      %p74 = scmp.eq.s32.totalorder %s13, 0
      %p75 = por %p73, %p74
      %p76 = scmp.ne.s32.totalorder %s65, %s68
      %p77 = scmp.eq.s32.totalorder %s18, 3
      %p78 = por %p76, %p77
      %p79 = scmp.ne.s32.totalorder %s68, %s69
      %p80 = scmp.eq.s32.totalorder %s18, 0
      %p81 = por %p79, %p80
      %p82 = scmp.ne.s32.totalorder %s68, %s69
      %p83 = scmp.eq.s32.totalorder %s19, 3
      %p84 = por %p82, %p83
      %p86 = scmp.ne.s32.totalorder %s69, %s85
      %p87 = scmp.eq.s32.totalorder %s19, 0
      %p88 = por %p86, %p87
      %s90 = sadd.s32 %s89, 1
      %p93 = scmp.eq.s32.totalorder %s13, 3
      %p94 = scmp.ne.s32.totalorder %s89, %s91
      %p95 = scmp.eq.s32.totalorder %s13, 0
      %p96 = por %p94, %p95
      %p97 = scmp.ne.s32.totalorder %s89, %s91
      %p98 = scmp.eq.s32.totalorder %s18, 3
      %p99 = por %p97, %p98
      %p100 = scmp.ne.s32.totalorder %s91, %s92
      %p101 = scmp.eq.s32.totalorder %s18, 0
      %p102 = por %p100, %p101
      %p103 = scmp.ne.s32.totalorder %s91, %s92
      %p104 = scmp.eq.s32.totalorder %s19, 3
      %p105 = por %p103, %p104
      %p107 = scmp.ne.s32.totalorder %s92, %s106
      %p108 = scmp.eq.s32.totalorder %s19, 0
      %p109 = por %p107, %p108
      %s111 = sadd.s32 %s110, 1
      %p114 = scmp.eq.s32.totalorder %s13, 3
      %p115 = scmp.ne.s32.totalorder %s110, %s112
      %p116 = scmp.eq.s32.totalorder %s13, 0
      %p117 = por %p115, %p116
      %p118 = scmp.ne.s32.totalorder %s110, %s112
      %p119 = scmp.eq.s32.totalorder %s18, 3
      %p120 = por %p118, %p119
      %p121 = scmp.ne.s32.totalorder %s112, %s113
      %p122 = scmp.eq.s32.totalorder %s18, 0
      %p123 = por %p121, %p122
      %p124 = scmp.ne.s32.totalorder %s112, %s113
      %p125 = scmp.eq.s32.totalorder %s19, 3
      %p126 = por %p124, %p125
      %p128 = scmp.ne.s32.totalorder %s113, %s127
      %p129 = scmp.eq.s32.totalorder %s19, 0
      %p130 = por %p128, %p129
      %s132 = sadd.s32 %s131, 1
      %p135 = scmp.eq.s32.totalorder %s13, 3
      %p136 = scmp.ne.s32.totalorder %s131, %s133
      %p137 = scmp.eq.s32.totalorder %s13, 0
      %p138 = por %p136, %p137
      %p139 = scmp.ne.s32.totalorder %s131, %s133
      %p140 = scmp.eq.s32.totalorder %s18, 3
      %p141 = por %p139, %p140
      %p142 = scmp.ne.s32.totalorder %s133, %s134
      %p143 = scmp.eq.s32.totalorder %s18, 0
      %p144 = por %p142, %p143
      %p145 = scmp.ne.s32.totalorder %s133, %s134
      %p146 = scmp.eq.s32.totalorder %s19, 3
      %p147 = por %p145, %p146
      %p149 = scmp.ne.s32.totalorder %s134, %s148
      %p150 = scmp.eq.s32.totalorder %s19, 0
      %p151 = por %p149, %p150
      %s153 = sadd.s32 %s152, 1
      %p156 = scmp.eq.s32.totalorder %s13, 3
      %p157 = scmp.ne.s32.totalorder %s152, %s154
      %p158 = scmp.eq.s32.totalorder %s13, 0
      %p159 = por %p157, %p158
      %p160 = scmp.ne.s32.totalorder %s152, %s154
      %p161 = scmp.eq.s32.totalorder %s18, 3
      %p162 = por %p160, %p161
      %p163 = scmp.ne.s32.totalorder %s154, %s155
      %p164 = scmp.eq.s32.totalorder %s18, 0
      %p165 = por %p163, %p164
      %p166 = scmp.ne.s32.totalorder %s154, %s155
      %p167 = scmp.eq.s32.totalorder %s19, 3
      %p168 = por %p166, %p167
      %p170 = scmp.ne.s32.totalorder %s155, %s169
      %p171 = scmp.eq.s32.totalorder %s19, 0
      %p172 = por %p170, %p171
      %s174 = sadd.s32 %s173, 1
      %p177 = scmp.eq.s32.totalorder %s13, 3
      %p178 = scmp.ne.s32.totalorder %s173, %s175
      %p179 = scmp.eq.s32.totalorder %s13, 0
      %p180 = por %p178, %p179
      %p181 = scmp.ne.s32.totalorder %s173, %s175
      %p182 = scmp.eq.s32.totalorder %s18, 3
      %p183 = por %p181, %p182
      %p184 = scmp.ne.s32.totalorder %s175, %s176
      %p185 = scmp.eq.s32.totalorder %s18, 0
      %p186 = por %p184, %p185
      %p187 = scmp.ne.s32.totalorder %s175, %s176
      %p188 = scmp.eq.s32.totalorder %s19, 3
      %p189 = por %p187, %p188
      %p191 = scmp.ne.s32.totalorder %s176, %s190
      %p192 = scmp.eq.s32.totalorder %s19, 0
      %p193 = por %p191, %p192
      %s194 = ssub.s32 %s20, %s32
      %p195 = scmp.eq.s32.totalorder %s194, 0
      %s197 = sadd.s32 %s196, 1
      %s198 = scalar_select %p195, %s196, %s197
      %p201 = pneg %p195
      %p202 = scmp.eq.s32.totalorder %s13, 3
      %p203 = por %p201, %p202
      %p204 = scmp.ne.s32.totalorder %s196, %s199
      %p205 = scmp.eq.s32.totalorder %s13, 0
      %p206 = por %p204, %p205
      %p207 = scmp.ne.s32.totalorder %s196, %s199
      %p208 = scmp.eq.s32.totalorder %s18, 3
      %p209 = por %p207, %p208
      %p210 = scmp.ne.s32.totalorder %s199, %s200
      %p211 = scmp.eq.s32.totalorder %s18, 0
      %p212 = por %p210, %p211
      %p213 = scmp.ne.s32.totalorder %s199, %s200
      %p214 = scmp.eq.s32.totalorder %s19, 3
      %p215 = por %p213, %p214
      %p217 = scmp.ne.s32.totalorder %s200, %s216
      %p218 = scmp.eq.s32.totalorder %s19, 0
      %p219 = por %p217, %p218
      %p220 = scmp.le.s32.totalorder 1, %s13
      %p221 = scmp.lt.s32.totalorder %s13, 5
      %p222 = pnand %p220, %p221
      %p223 = pneg %p222
      // Predicated region
      $region9: #{tpu_custom_call.1} parent=5 // pred_check
        _
      $region10: #{tpu_custom_call.1} parent=5 // pred_check_branch
        %225 = sbr.rel (%p222) target = $region12
      $region11: #{tpu_custom_call.1} parent=5 // pred_region
        %s226 = ssub.s32 %s13, 1
        // Predicated region
        $region13: #{tpu_custom_call.1} parent=11 // pred_check
          %p227 = pneg %p102
        $region14: #{tpu_custom_call.1} parent=11 // pred_check_branch
          %229 = sbr.rel (%p227) target = $region16
        $region15: #{tpu_custom_call.1} parent=11 // pred_region
          _
        $region16: #{tpu_custom_call.1} parent=11 // pred_fallthru
          _
        // Predicated region
        $region17: #{tpu_custom_call.1} parent=11 // pred_check
          %p230 = pneg %p123
        $region18: #{tpu_custom_call.1} parent=11 // pred_check_branch
          %232 = sbr.rel (%p230) target = $region20
        $region19: #{tpu_custom_call.1} parent=11 // pred_region
          _
        $region20: #{tpu_custom_call.1} parent=11 // pred_fallthru
          _
        // Predicated region
        $region21: #{tpu_custom_call.1} parent=11 // pred_check
          %p233 = pneg %p144
        $region22: #{tpu_custom_call.1} parent=11 // pred_check_branch
          %235 = sbr.rel (%p233) target = $region24
        $region23: #{tpu_custom_call.1} parent=11 // pred_region
          _
        $region24: #{tpu_custom_call.1} parent=11 // pred_fallthru
          _
        // Predicated region
        $region25: #{tpu_custom_call.1} parent=11 // pred_check
          %p236 = pneg %p165
        $region26: #{tpu_custom_call.1} parent=11 // pred_check_branch
          %238 = sbr.rel (%p236) target = $region28
        $region27: #{tpu_custom_call.1} parent=11 // pred_region
          _
        $region28: #{tpu_custom_call.1} parent=11 // pred_fallthru
          _
        // Predicated region
        $region29: #{tpu_custom_call.1} parent=11 // pred_check
          %p239 = pneg %p186
        $region30: #{tpu_custom_call.1} parent=11 // pred_check_branch
          %241 = sbr.rel (%p239) target = $region32
        $region31: #{tpu_custom_call.1} parent=11 // pred_region
          _
        $region32: #{tpu_custom_call.1} parent=11 // pred_fallthru
          _
      $region12: #{tpu_custom_call.1} parent=5 // pred_fallthru
        _
      %p242 = scmp.lt.s32.totalorder %s13, 4
      // Predicated region
      $region33: #{tpu_custom_call.1} parent=5 // pred_check
        %p243 = pneg %p242
      $region34: #{tpu_custom_call.1} parent=5 // pred_check_branch
        %245 = sbr.rel (%p243) target = $region36
      $region35: #{tpu_custom_call.1} parent=5 // pred_region
        // Predicated region
        $region37: #{tpu_custom_call.1} parent=35 // pred_check
          %p246 = pneg %p47
        $region38: #{tpu_custom_call.1} parent=35 // pred_check_branch
          %248 = sbr.rel (%p246) target = $region40
        $region39: #{tpu_custom_call.1} parent=35 // pred_region
          %s249 = sand.u32 %s37, 1
          %s250 = sand.u32 %s37, 1
          %s251 = smul.addr %s250, 32
          %s252 = scalar_lea.vmem [#allocation3], %s251
          %s253 = smul.addr %s20, 16
          %s254 = sadd.s32 %s21, %s253
          %s255 = smul.addr %s254, 4
          %s256 = scalar_lea.vmem %s0, %s255
          // Predicated region
          $region41: #{tpu_custom_call.1} parent=39 // pred_check
            _
          $region42: #{tpu_custom_call.1} parent=39 // pred_check_branch
            %258 = sbr.rel (0) target = $region44
          $region43: #{tpu_custom_call.1} parent=39 // pred_region
            // Predicated region
            $region45: #{tpu_custom_call.1} parent=43 // pred_check
              _
            $region46: #{tpu_custom_call.1} parent=43 // pred_check_branch
              %260 = sbr.rel target = $region48
            $region47: #{tpu_custom_call.1} parent=43 // pred_region
              // Predicated region
              $region60: #{tpu_custom_call.1} parent=47 // pred_check
                _
              $region61: #{tpu_custom_call.1} parent=47 // pred_check_branch
                %290 = sbr.rel (0) target = $region63
              $region62: #{tpu_custom_call.1} parent=47 // pred_region
                loop: start=0, step=1, limit=1
                $region64: #{tpu_custom_call.1} parent=62 // loop_pre_header
                  _
                $region65: #{tpu_custom_call.1} parent=62 // loop_header
                  %s292 = sphi 0, %s296
                  %p293 = scmp.ge.s32.totalorder %s292, 1
                  %s297 = sphi %s256, %s256
                  %s298 = sphi %s252, %s252
                $region66: #{tpu_custom_call.1} parent=62 // loop_header_branch
                  %295 = sbr.rel (%p293) target = $region70
                $region67: #{tpu_custom_call.1} parent=62 // loop_body
                  _
                $region68: #{tpu_custom_call.1} parent=62 // loop_footer
                  %s296 = sadd.s32 1, %s292
                $region69: #{tpu_custom_call.1} parent=62 // loop_footer_branch
                  %291 = sbr.rel target = $region65
                $region70: #{tpu_custom_call.1} parent=62 // loop_exit
                  _
                %s300 = ssub.s32 16, 1
                loop: start=0, step=1, limit=1
                $region71: #{tpu_custom_call.1} parent=62 // loop_pre_header
                  _
                $region72: #{tpu_custom_call.1} parent=62 // loop_header
                  %s302 = sphi 0, %s306
                  %p303 = scmp.ge.s32.totalorder %s302, 1
                  %s307 = sphi %s256, %s256
                  %s308 = sphi %s252, %s252
                $region73: #{tpu_custom_call.1} parent=62 // loop_header_branch
                  %305 = sbr.rel (%p303) target = $region77
                $region74: #{tpu_custom_call.1} parent=62 // loop_body
                  %v309 = vld [vmem:[%s307] sm:%s300]
                  %310 = vst [vmem:[%s308] sm:%s300] %v309
                  %v311 = vld [vmem:[%s307 + $0x8] sm:%s300]
                  %312 = vst [vmem:[%s308 + $0x4] sm:%s300] %v311
                  %v313 = vld [vmem:[%s307 + $0x10] sm:%s300]
                  %314 = vst [vmem:[%s308 + $0x8] sm:%s300] %v313
                  %v315 = vld [vmem:[%s307 + $0x18] sm:%s300]
                  %316 = vst [vmem:[%s308 + $0xc] sm:%s300] %v315
                  %v317 = vld [vmem:[%s307 + $0x20] sm:%s300]
                  %318 = vst [vmem:[%s308 + $0x10] sm:%s300] %v317
                  %v319 = vld [vmem:[%s307 + $0x28] sm:%s300]
                  %320 = vst [vmem:[%s308 + $0x14] sm:%s300] %v319
                  %v321 = vld [vmem:[%s307 + $0x30] sm:%s300]
                  %322 = vst [vmem:[%s308 + $0x18] sm:%s300] %v321
                  %v323 = vld [vmem:[%s307 + $0x38] sm:%s300]
                  %324 = vst [vmem:[%s308 + $0x1c] sm:%s300] %v323
                $region75: #{tpu_custom_call.1} parent=62 // loop_footer
                  %s306 = sadd.s32 1, %s302
                $region76: #{tpu_custom_call.1} parent=62 // loop_footer_branch
                  %301 = sbr.rel target = $region72
                $region77: #{tpu_custom_call.1} parent=62 // loop_exit
                  _
              $region63: #{tpu_custom_call.1} parent=47 // pred_fallthru
                _
            $region48: #{tpu_custom_call.1} parent=43 // pred_fallthru
              _
            // Predicated region
            $region49: #{tpu_custom_call.1} parent=43 // pred_check
              _
            $region50: #{tpu_custom_call.1} parent=43 // pred_check_branch
              %262 = sbr.rel (0) target = $region52
            $region51: #{tpu_custom_call.1} parent=43 // pred_region
              %s264 = ssub.s32 16, 1
              loop: start=0, step=1, limit=1
              $region53: #{tpu_custom_call.1} parent=51 // loop_pre_header
                _
              $region54: #{tpu_custom_call.1} parent=51 // loop_header
                %s266 = sphi 0, %s270
                %p267 = scmp.ge.s32.totalorder %s266, 1
                %s271 = sphi %s256, %s256
                %s272 = sphi %s252, %s252
              $region55: #{tpu_custom_call.1} parent=51 // loop_header_branch
                %269 = sbr.rel (%p267) target = $region59
              $region56: #{tpu_custom_call.1} parent=51 // loop_body
                %v273 = vld [vmem:[%s271] sm:%s264]
                %274 = vst [vmem:[%s272] sm:%s264] %v273
                %v275 = vld [vmem:[%s271 + $0x8] sm:%s264]
                %276 = vst [vmem:[%s272 + $0x4] sm:%s264] %v275
                %v277 = vld [vmem:[%s271 + $0x10] sm:%s264]
                %278 = vst [vmem:[%s272 + $0x8] sm:%s264] %v277
                %v279 = vld [vmem:[%s271 + $0x18] sm:%s264]
                %280 = vst [vmem:[%s272 + $0xc] sm:%s264] %v279
                %v281 = vld [vmem:[%s271 + $0x20] sm:%s264]
                %282 = vst [vmem:[%s272 + $0x10] sm:%s264] %v281
                %v283 = vld [vmem:[%s271 + $0x28] sm:%s264]
                %284 = vst [vmem:[%s272 + $0x14] sm:%s264] %v283
                %v285 = vld [vmem:[%s271 + $0x30] sm:%s264]
                %286 = vst [vmem:[%s272 + $0x18] sm:%s264] %v285
                %v287 = vld [vmem:[%s271 + $0x38] sm:%s264]
                %288 = vst [vmem:[%s272 + $0x1c] sm:%s264] %v287
              $region57: #{tpu_custom_call.1} parent=51 // loop_footer
                %s270 = sadd.s32 1, %s266
              $region58: #{tpu_custom_call.1} parent=51 // loop_footer_branch
                %265 = sbr.rel target = $region54
              $region59: #{tpu_custom_call.1} parent=51 // loop_exit
                _
            $region52: #{tpu_custom_call.1} parent=43 // pred_fallthru
              _
          $region44: #{tpu_custom_call.1} parent=39 // pred_fallthru
            _
          %325 = vnop
        $region40: #{tpu_custom_call.1} parent=35 // pred_fallthru
          _
        // Predicated region
        $region78: #{tpu_custom_call.1} parent=35 // pred_check
          %p326 = pneg %p75
        $region79: #{tpu_custom_call.1} parent=35 // pred_check_branch
          %328 = sbr.rel (%p326) target = $region81
        $region80: #{tpu_custom_call.1} parent=35 // pred_region
          %s329 = sand.u32 %s65, 1
          %s330 = sand.u32 %s65, 1
          %s331 = smul.addr %s330, 32
          %s332 = scalar_lea.vmem [#allocation4], %s331
          %s333 = smul.addr %s20, 16
          %s334 = sadd.s32 %s21, %s333
          %s335 = smul.addr %s334, 4
          %s336 = scalar_lea.vmem %s1, %s335
          // Predicated region
          $region82: #{tpu_custom_call.1} parent=80 // pred_check
            _
          $region83: #{tpu_custom_call.1} parent=80 // pred_check_branch
            %338 = sbr.rel (0) target = $region85
          $region84: #{tpu_custom_call.1} parent=80 // pred_region
            // Predicated region
            $region86: #{tpu_custom_call.1} parent=84 // pred_check
              _
            $region87: #{tpu_custom_call.1} parent=84 // pred_check_branch
              %340 = sbr.rel target = $region89
            $region88: #{tpu_custom_call.1} parent=84 // pred_region
              // Predicated region
              $region101: #{tpu_custom_call.1} parent=88 // pred_check
                _
              $region102: #{tpu_custom_call.1} parent=88 // pred_check_branch
                %370 = sbr.rel (0) target = $region104
              $region103: #{tpu_custom_call.1} parent=88 // pred_region
                loop: start=0, step=1, limit=1
                $region105: #{tpu_custom_call.1} parent=103 // loop_pre_header
                  _
                $region106: #{tpu_custom_call.1} parent=103 // loop_header
                  %s372 = sphi 0, %s376
                  %p373 = scmp.ge.s32.totalorder %s372, 1
                  %s377 = sphi %s336, %s336
                  %s378 = sphi %s332, %s332
                $region107: #{tpu_custom_call.1} parent=103 // loop_header_branch
                  %375 = sbr.rel (%p373) target = $region111
                $region108: #{tpu_custom_call.1} parent=103 // loop_body
                  _
                $region109: #{tpu_custom_call.1} parent=103 // loop_footer
                  %s376 = sadd.s32 1, %s372
                $region110: #{tpu_custom_call.1} parent=103 // loop_footer_branch
                  %371 = sbr.rel target = $region106
                $region111: #{tpu_custom_call.1} parent=103 // loop_exit
                  _
                %s380 = ssub.s32 16, 1
                loop: start=0, step=1, limit=1
                $region112: #{tpu_custom_call.1} parent=103 // loop_pre_header
                  _
                $region113: #{tpu_custom_call.1} parent=103 // loop_header
                  %s382 = sphi 0, %s386
                  %p383 = scmp.ge.s32.totalorder %s382, 1
                  %s387 = sphi %s336, %s336
                  %s388 = sphi %s332, %s332
                $region114: #{tpu_custom_call.1} parent=103 // loop_header_branch
                  %385 = sbr.rel (%p383) target = $region118
                $region115: #{tpu_custom_call.1} parent=103 // loop_body
                  %v389 = vld [vmem:[%s387] sm:%s380]
                  %390 = vst [vmem:[%s388] sm:%s380] %v389
                  %v391 = vld [vmem:[%s387 + $0x8] sm:%s380]
                  %392 = vst [vmem:[%s388 + $0x4] sm:%s380] %v391
                  %v393 = vld [vmem:[%s387 + $0x10] sm:%s380]
                  %394 = vst [vmem:[%s388 + $0x8] sm:%s380] %v393
                  %v395 = vld [vmem:[%s387 + $0x18] sm:%s380]
                  %396 = vst [vmem:[%s388 + $0xc] sm:%s380] %v395
                  %v397 = vld [vmem:[%s387 + $0x20] sm:%s380]
                  %398 = vst [vmem:[%s388 + $0x10] sm:%s380] %v397
                  %v399 = vld [vmem:[%s387 + $0x28] sm:%s380]
                  %400 = vst [vmem:[%s388 + $0x14] sm:%s380] %v399
                  %v401 = vld [vmem:[%s387 + $0x30] sm:%s380]
                  %402 = vst [vmem:[%s388 + $0x18] sm:%s380] %v401
                  %v403 = vld [vmem:[%s387 + $0x38] sm:%s380]
                  %404 = vst [vmem:[%s388 + $0x1c] sm:%s380] %v403
                $region116: #{tpu_custom_call.1} parent=103 // loop_footer
                  %s386 = sadd.s32 1, %s382
                $region117: #{tpu_custom_call.1} parent=103 // loop_footer_branch
                  %381 = sbr.rel target = $region113
                $region118: #{tpu_custom_call.1} parent=103 // loop_exit
                  _
              $region104: #{tpu_custom_call.1} parent=88 // pred_fallthru
                _
            $region89: #{tpu_custom_call.1} parent=84 // pred_fallthru
              _
            // Predicated region
            $region90: #{tpu_custom_call.1} parent=84 // pred_check
              _
            $region91: #{tpu_custom_call.1} parent=84 // pred_check_branch
              %342 = sbr.rel (0) target = $region93
            $region92: #{tpu_custom_call.1} parent=84 // pred_region
              %s344 = ssub.s32 16, 1
              loop: start=0, step=1, limit=1
              $region94: #{tpu_custom_call.1} parent=92 // loop_pre_header
                _
              $region95: #{tpu_custom_call.1} parent=92 // loop_header
                %s346 = sphi 0, %s350
                %p347 = scmp.ge.s32.totalorder %s346, 1
                %s351 = sphi %s336, %s336
                %s352 = sphi %s332, %s332
              $region96: #{tpu_custom_call.1} parent=92 // loop_header_branch
                %349 = sbr.rel (%p347) target = $region100
              $region97: #{tpu_custom_call.1} parent=92 // loop_body
                %v353 = vld [vmem:[%s351] sm:%s344]
                %354 = vst [vmem:[%s352] sm:%s344] %v353
                %v355 = vld [vmem:[%s351 + $0x8] sm:%s344]
                %356 = vst [vmem:[%s352 + $0x4] sm:%s344] %v355
                %v357 = vld [vmem:[%s351 + $0x10] sm:%s344]
                %358 = vst [vmem:[%s352 + $0x8] sm:%s344] %v357
                %v359 = vld [vmem:[%s351 + $0x18] sm:%s344]
                %360 = vst [vmem:[%s352 + $0xc] sm:%s344] %v359
                %v361 = vld [vmem:[%s351 + $0x20] sm:%s344]
                %362 = vst [vmem:[%s352 + $0x10] sm:%s344] %v361
                %v363 = vld [vmem:[%s351 + $0x28] sm:%s344]
                %364 = vst [vmem:[%s352 + $0x14] sm:%s344] %v363
                %v365 = vld [vmem:[%s351 + $0x30] sm:%s344]
                %366 = vst [vmem:[%s352 + $0x18] sm:%s344] %v365
                %v367 = vld [vmem:[%s351 + $0x38] sm:%s344]
                %368 = vst [vmem:[%s352 + $0x1c] sm:%s344] %v367
              $region98: #{tpu_custom_call.1} parent=92 // loop_footer
                %s350 = sadd.s32 1, %s346
              $region99: #{tpu_custom_call.1} parent=92 // loop_footer_branch
                %345 = sbr.rel target = $region95
              $region100: #{tpu_custom_call.1} parent=92 // loop_exit
                _
            $region93: #{tpu_custom_call.1} parent=84 // pred_fallthru
              _
          $region85: #{tpu_custom_call.1} parent=80 // pred_fallthru
            _
          %405 = vnop
        $region81: #{tpu_custom_call.1} parent=35 // pred_fallthru
          _
      $region36: #{tpu_custom_call.1} parent=5 // pred_fallthru
        _
      %p406 = scmp.le.s32.totalorder 1, %s13
      %p407 = scmp.lt.s32.totalorder %s13, 5
      %p408 = pnand %p406, %p407
      %p409 = pneg %p408
      // Predicated region
      $region119: #{tpu_custom_call.1} parent=5 // pred_check
        _
      $region120: #{tpu_custom_call.1} parent=5 // pred_check_branch
        %411 = sbr.rel (%p408) target = $region122
      $region121: #{tpu_custom_call.1} parent=5 // pred_region
        %s412 = ssub.s32 %s13, 1
        %s413 = sand.u32 %s40, 1
        %s414 = sand.u32 %s40, 1
        %s415 = smul.addr %s414, 32
        %s416 = scalar_lea.vmem [#allocation3], %s415
        // Predicated region
        $region123: #{tpu_custom_call.1} parent=121 // pred_check
          %p417 = pneg %p53
        $region124: #{tpu_custom_call.1} parent=121 // pred_check_branch
          %419 = sbr.rel (%p417) target = $region126
        $region125: #{tpu_custom_call.1} parent=121 // pred_region
          _
        $region126: #{tpu_custom_call.1} parent=121 // pred_fallthru
          _
        %s420 = sand.u32 %s68, 1
        %s421 = sand.u32 %s68, 1
        %s422 = smul.addr %s421, 32
        %s423 = scalar_lea.vmem [#allocation4], %s422
        // Predicated region
        $region127: #{tpu_custom_call.1} parent=121 // pred_check
          %p424 = pneg %p81
        $region128: #{tpu_custom_call.1} parent=121 // pred_check_branch
          %426 = sbr.rel (%p424) target = $region130
        $region129: #{tpu_custom_call.1} parent=121 // pred_region
          _
        $region130: #{tpu_custom_call.1} parent=121 // pred_fallthru
          _
        %s427 = sand.u32 %s40, 1
        %s428 = sand.u32 %s40, 1
        %s429 = smul.addr %s428, 32
        %s430 = scalar_lea.vmem [#allocation3], %s429
        %p431 = pneg %p53
        %p432 = pneg %p50
        %s433 = sand.u32 %s68, 1
        %s434 = sand.u32 %s68, 1
        %s435 = smul.addr %s434, 32
        %s436 = scalar_lea.vmem [#allocation4], %s435
        %p437 = pneg %p81
        %p438 = pneg %p78
        %p439 = pneg %p102
        %p440 = pneg %p99
        %p441 = pneg %p123
        %p442 = pneg %p120
        %p443 = pneg %p144
        %p444 = pneg %p141
        %p445 = pneg %p165
        %p446 = pneg %p162
        %p447 = pneg %p186
        %p448 = pneg %p183
        %p449 = pneg %p212
        %p450 = pneg %p209
        %p451 = scmp.lt.s32.totalorder %s22, 1
        %s452 = scalar_select %p451, %s22, 1
        %s453 = smul.addr %s452, 16
        %s454 = smul.addr %s453, 8
        %s455 = scalar_lea.vmem %s7, %s454
        %p456 = scmp.lt.s32.totalorder %s22, 1
        %s457 = scalar_select %p456, %s22, 1
        %s458 = smul.addr %s457, 16
        %s459 = smul.addr %s458, 8
        %s460 = scalar_lea.vmem %s7, %s459
        %v461 = vld [vmem:[%s416] sm:$0xf]
        %v462 = vld [vmem:[%s416 + $0x4] sm:$0xf]
        %v463 = vld [vmem:[%s416 + $0x8] sm:$0xf]
        %v464 = vld [vmem:[%s416 + $0xc] sm:$0xf]
        %v465 = vld [vmem:[%s416 + $0x10] sm:$0xf]
        %v466 = vld [vmem:[%s416 + $0x14] sm:$0xf]
        %v467 = vld [vmem:[%s416 + $0x18] sm:$0xf]
        %v468 = vld [vmem:[%s416 + $0x1c] sm:$0xf]
        %v469 = vld [vmem:[%s423] sm:$0xf]
        %v470 = vld [vmem:[%s423 + $0x4] sm:$0xf]
        %v471 = vld [vmem:[%s423 + $0x8] sm:$0xf]
        %v472 = vld [vmem:[%s423 + $0xc] sm:$0xf]
        %v473 = vld [vmem:[%s423 + $0x10] sm:$0xf]
        %v474 = vld [vmem:[%s423 + $0x14] sm:$0xf]
        %v475 = vld [vmem:[%s423 + $0x18] sm:$0xf]
        %v476 = vld [vmem:[%s423 + $0x1c] sm:$0xf]
        %v485 = vunpack.c.l.b16 %v461
        %v486 = vunpack.c.l.b16 %v462
        %v487 = vunpack.c.l.b16 %v463
        %v488 = vunpack.c.l.b16 %v464
        %v489 = vunpack.c.l.b16 %v465
        %v490 = vunpack.c.l.b16 %v466
        %v491 = vunpack.c.l.b16 %v467
        %v492 = vunpack.c.l.b16 %v468
        %v493 = vpack.c.b16 %v486, %v485
        %v494 = vpack.c.b16 %v488, %v487
        %v495 = vpack.c.b16 %v490, %v489
        %v496 = vpack.c.b16 %v492, %v491
        %v509 = vunpack.c.l.b16 %v469
        %v510 = vunpack.c.l.b16 %v470
        %v511 = vunpack.c.l.b16 %v471
        %v512 = vunpack.c.l.b16 %v472
        %v513 = vunpack.c.l.b16 %v473
        %v514 = vunpack.c.l.b16 %v474
        %v515 = vunpack.c.l.b16 %v475
        %v516 = vunpack.c.l.b16 %v476
        %v517 = vpack.c.b16 %v510, %v509
        %v518 = vpack.c.b16 %v512, %v511
        %v519 = vpack.c.b16 %v514, %v513
        %v520 = vpack.c.b16 %v516, %v515
        %v525 = vld [vmem:[%s2] sm:$0xf]
        %v526 = vld [vmem:[%s2 + $0x4] sm:$0xf]
        %v527 = vld [vmem:[%s2 + $0x8] sm:$0xf]
        %v528 = vld [vmem:[%s2 + $0xc] sm:$0xf]
        %v529 = vld [vmem:[%s2 + $0x10] sm:$0xf]
        %v530 = vld [vmem:[%s2 + $0x14] sm:$0xf]
        %v531 = vld [vmem:[%s2 + $0x18] sm:$0xf]
        %v532 = vld [vmem:[%s2 + $0x1c] sm:$0xf]
        %v533 = vld [vmem:[%s2 + $0x20] sm:$0xf]
        %v534 = vld [vmem:[%s2 + $0x24] sm:$0xf]
        %v535 = vld [vmem:[%s2 + $0x28] sm:$0xf]
        %v536 = vld [vmem:[%s2 + $0x2c] sm:$0xf]
        %v537 = vld [vmem:[%s2 + $0x30] sm:$0xf]
        %v538 = vld [vmem:[%s2 + $0x34] sm:$0xf]
        %v539 = vld [vmem:[%s2 + $0x38] sm:$0xf]
        %v540 = vld [vmem:[%s2 + $0x3c] sm:$0xf]
        %v557 = vunpack.c.l.b16 %v525
        %v558 = vunpack.c.l.b16 %v526
        %v559 = vunpack.c.l.b16 %v527
        %v560 = vunpack.c.l.b16 %v528
        %v561 = vunpack.c.l.b16 %v529
        %v562 = vunpack.c.l.b16 %v530
        %v563 = vunpack.c.l.b16 %v531
        %v564 = vunpack.c.l.b16 %v532
        %v565 = vunpack.c.l.b16 %v533
        %v566 = vunpack.c.l.b16 %v534
        %v567 = vunpack.c.l.b16 %v535
        %v568 = vunpack.c.l.b16 %v536
        %v569 = vunpack.c.l.b16 %v537
        %v570 = vunpack.c.l.b16 %v538
        %v571 = vunpack.c.l.b16 %v539
        %v572 = vunpack.c.l.b16 %v540
        %v573 = vpack.c.b16 %v558, %v557
        %v574 = vpack.c.b16 %v560, %v559
        %v575 = vpack.c.b16 %v562, %v561
        %v576 = vpack.c.b16 %v564, %v563
        %v577 = vpack.c.b16 %v566, %v565
        %v578 = vpack.c.b16 %v568, %v567
        %v579 = vpack.c.b16 %v570, %v569
        %v580 = vpack.c.b16 %v572, %v571
        %589 = vmatpush.bf16.msra.mxu0 %v520
        %590 = vmatpush.bf16.msra.mxu0 %v519
        %591 = vmatpush.bf16.msra.mxu0 %v518
        %592 = vmatpush.bf16.msra.mxu0 %v517
        %593 = vmatpush.bf16.msra.mxu0 %v496
        %594 = vmatpush.bf16.msra.mxu0 %v495
        %595 = vmatpush.bf16.msra.mxu0 %v494
        %596 = vmatpush.bf16.msra.mxu0 %v493
        %597 = vmatmul.bf16.gmra.mxu0 %v573
        %v598 = vpop.f32.mrf.mxu0
        %v599 = vadd.f32 0.0, %v598
        %v600 = vpop.f32.mrf.mxu0
        %v601 = vadd.f32 0.0, %v600
        %602 = vmatmul.bf16.gmra.mxu0 %v574
        %v603 = vpop.f32.mrf.mxu0
        %v604 = vadd.f32 0.0, %v603
        %v605 = vpop.f32.mrf.mxu0
        %v606 = vadd.f32 0.0, %v605
        %607 = vmatmul.bf16.gmra.mxu0 %v575
        %v608 = vpop.f32.mrf.mxu0
        %v609 = vadd.f32 0.0, %v608
        %v610 = vpop.f32.mrf.mxu0
        %v611 = vadd.f32 0.0, %v610
        %612 = vmatmul.bf16.gmra.mxu0 %v576
        %v613 = vpop.f32.mrf.mxu0
        %v614 = vadd.f32 0.0, %v613
        %v615 = vpop.f32.mrf.mxu0
        %v616 = vadd.f32 0.0, %v615
        %617 = vmatmul.bf16.gmra.mxu0 %v577
        %v618 = vpop.f32.mrf.mxu0
        %v619 = vadd.f32 0.0, %v618
        %v620 = vpop.f32.mrf.mxu0
        %v621 = vadd.f32 0.0, %v620
        %622 = vmatmul.bf16.gmra.mxu0 %v578
        %v623 = vpop.f32.mrf.mxu0
        %v624 = vadd.f32 0.0, %v623
        %v625 = vpop.f32.mrf.mxu0
        %v626 = vadd.f32 0.0, %v625
        %627 = vmatmul.bf16.gmra.mxu0 %v579
        %v628 = vpop.f32.mrf.mxu0
        %v629 = vadd.f32 0.0, %v628
        %v630 = vpop.f32.mrf.mxu0
        %v631 = vadd.f32 0.0, %v630
        %632 = vmatmul.bf16.gmra.mxu0 %v580
        %v633 = vpop.f32.mrf.mxu0
        %v634 = vadd.f32 0.0, %v633
        %v635 = vpop.f32.mrf.mxu0
        %v636 = vadd.f32 0.0, %v635
        %637 = vdwg.mxu0
        %v638 = vld [vmem:[%s3] sm:$0xff]
        %v639 = vld [vmem:[%s3 + $0x8] sm:$0xff]
        %v640 = vld [vmem:[%s3 + $0x10] sm:$0xff]
        %v641 = vld [vmem:[%s3 + $0x18] sm:$0xff]
        %v642 = vld [vmem:[%s3 + $0x20] sm:$0xff]
        %v643 = vld [vmem:[%s3 + $0x28] sm:$0xff]
        %v644 = vld [vmem:[%s3 + $0x30] sm:$0xff]
        %v645 = vld [vmem:[%s3 + $0x38] sm:$0xff]
        %v646 = vld [vmem:[%s3 + $0x40] sm:$0xff]
        %v647 = vld [vmem:[%s3 + $0x48] sm:$0xff]
        %v648 = vld [vmem:[%s3 + $0x50] sm:$0xff]
        %v649 = vld [vmem:[%s3 + $0x58] sm:$0xff]
        %v650 = vld [vmem:[%s3 + $0x60] sm:$0xff]
        %v651 = vld [vmem:[%s3 + $0x68] sm:$0xff]
        %v652 = vld [vmem:[%s3 + $0x70] sm:$0xff]
        %v653 = vld [vmem:[%s3 + $0x78] sm:$0xff]
        %655 = vset.pattern.permute.xlu0 0
        %656 = vperm.xlu0 %655, %v638
        %v657 = vpop.permute.xlu0 %656
        %660 = vset.pattern.permute.xlu0 0
        %661 = vperm.xlu0 %660, %v639
        %v662 = vpop.permute.xlu0 %661
        %665 = vset.pattern.permute.xlu0 0
        %666 = vperm.xlu0 %665, %v640
        %v667 = vpop.permute.xlu0 %666
        %670 = vset.pattern.permute.xlu0 0
        %671 = vperm.xlu0 %670, %v641
        %v672 = vpop.permute.xlu0 %671
        %675 = vset.pattern.permute.xlu0 0
        %676 = vperm.xlu0 %675, %v642
        %v677 = vpop.permute.xlu0 %676
        %680 = vset.pattern.permute.xlu0 0
        %681 = vperm.xlu0 %680, %v643
        %v682 = vpop.permute.xlu0 %681
        %685 = vset.pattern.permute.xlu0 0
        %686 = vperm.xlu0 %685, %v644
        %v687 = vpop.permute.xlu0 %686
        %690 = vset.pattern.permute.xlu0 0
        %691 = vperm.xlu0 %690, %v645
        %v692 = vpop.permute.xlu0 %691
        %695 = vset.pattern.permute.xlu0 0
        %696 = vperm.xlu0 %695, %v646
        %v697 = vpop.permute.xlu0 %696
        %700 = vset.pattern.permute.xlu0 0
        %701 = vperm.xlu0 %700, %v647
        %v702 = vpop.permute.xlu0 %701
        %705 = vset.pattern.permute.xlu0 0
        %706 = vperm.xlu0 %705, %v648
        %v707 = vpop.permute.xlu0 %706
        %710 = vset.pattern.permute.xlu0 0
        %711 = vperm.xlu0 %710, %v649
        %v712 = vpop.permute.xlu0 %711
        %715 = vset.pattern.permute.xlu0 0
        %716 = vperm.xlu0 %715, %v650
        %v717 = vpop.permute.xlu0 %716
        %720 = vset.pattern.permute.xlu0 0
        %721 = vperm.xlu0 %720, %v651
        %v722 = vpop.permute.xlu0 %721
        %725 = vset.pattern.permute.xlu0 0
        %726 = vperm.xlu0 %725, %v652
        %v727 = vpop.permute.xlu0 %726
        %730 = vset.pattern.permute.xlu0 0
        %731 = vperm.xlu0 %730, %v653
        %v732 = vpop.permute.xlu0 %731
        %v734 = vmul.f32 %v599, %v657
        %v735 = vmul.f32 %v601, %v662
        %v736 = vmul.f32 %v604, %v667
        %v737 = vmul.f32 %v606, %v672
        %v738 = vmul.f32 %v609, %v677
        %v739 = vmul.f32 %v611, %v682
        %v740 = vmul.f32 %v614, %v687
        %v741 = vmul.f32 %v616, %v692
        %v742 = vmul.f32 %v619, %v697
        %v743 = vmul.f32 %v621, %v702
        %v744 = vmul.f32 %v624, %v707
        %v745 = vmul.f32 %v626, %v712
        %v746 = vmul.f32 %v629, %v717
        %v747 = vmul.f32 %v631, %v722
        %v748 = vmul.f32 %v634, %v727
        %v749 = vmul.f32 %v636, %v732
        %v750 = vld [vmem:[%s4] sm:$0xff]
        %v751 = vld [vmem:[%s4 + $0x8] sm:$0xff]
        %v752 = vld [vmem:[%s4 + $0x10] sm:$0xff]
        %v753 = vld [vmem:[%s4 + $0x18] sm:$0xff]
        %v754 = vld [vmem:[%s4 + $0x20] sm:$0xff]
        %v755 = vld [vmem:[%s4 + $0x28] sm:$0xff]
        %v756 = vld [vmem:[%s4 + $0x30] sm:$0xff]
        %v757 = vld [vmem:[%s4 + $0x38] sm:$0xff]
        %v758 = vld [vmem:[%s4 + $0x40] sm:$0xff]
        %v759 = vld [vmem:[%s4 + $0x48] sm:$0xff]
        %v760 = vld [vmem:[%s4 + $0x50] sm:$0xff]
        %v761 = vld [vmem:[%s4 + $0x58] sm:$0xff]
        %v762 = vld [vmem:[%s4 + $0x60] sm:$0xff]
        %v763 = vld [vmem:[%s4 + $0x68] sm:$0xff]
        %v764 = vld [vmem:[%s4 + $0x70] sm:$0xff]
        %v765 = vld [vmem:[%s4 + $0x78] sm:$0xff]
        %767 = vset.pattern.permute.xlu0 0
        %768 = vperm.xlu0 %767, %v750
        %v769 = vpop.permute.xlu0 %768
        %772 = vset.pattern.permute.xlu0 0
        %773 = vperm.xlu0 %772, %v751
        %v774 = vpop.permute.xlu0 %773
        %777 = vset.pattern.permute.xlu0 0
        %778 = vperm.xlu0 %777, %v752
        %v779 = vpop.permute.xlu0 %778
        %782 = vset.pattern.permute.xlu0 0
        %783 = vperm.xlu0 %782, %v753
        %v784 = vpop.permute.xlu0 %783
        %787 = vset.pattern.permute.xlu0 0
        %788 = vperm.xlu0 %787, %v754
        %v789 = vpop.permute.xlu0 %788
        %792 = vset.pattern.permute.xlu0 0
        %793 = vperm.xlu0 %792, %v755
        %v794 = vpop.permute.xlu0 %793
        %797 = vset.pattern.permute.xlu0 0
        %798 = vperm.xlu0 %797, %v756
        %v799 = vpop.permute.xlu0 %798
        %802 = vset.pattern.permute.xlu0 0
        %803 = vperm.xlu0 %802, %v757
        %v804 = vpop.permute.xlu0 %803
        %807 = vset.pattern.permute.xlu0 0
        %808 = vperm.xlu0 %807, %v758
        %v809 = vpop.permute.xlu0 %808
        %812 = vset.pattern.permute.xlu0 0
        %813 = vperm.xlu0 %812, %v759
        %v814 = vpop.permute.xlu0 %813
        %817 = vset.pattern.permute.xlu0 0
        %818 = vperm.xlu0 %817, %v760
        %v819 = vpop.permute.xlu0 %818
        %822 = vset.pattern.permute.xlu0 0
        %823 = vperm.xlu0 %822, %v761
        %v824 = vpop.permute.xlu0 %823
        %827 = vset.pattern.permute.xlu0 0
        %828 = vperm.xlu0 %827, %v762
        %v829 = vpop.permute.xlu0 %828
        %832 = vset.pattern.permute.xlu0 0
        %833 = vperm.xlu0 %832, %v763
        %v834 = vpop.permute.xlu0 %833
        %837 = vset.pattern.permute.xlu0 0
        %838 = vperm.xlu0 %837, %v764
        %v839 = vpop.permute.xlu0 %838
        %842 = vset.pattern.permute.xlu0 0
        %843 = vperm.xlu0 %842, %v765
        %v844 = vpop.permute.xlu0 %843
        %v846 = vadd.f32 %v734, %v769
        %v847 = vadd.f32 %v735, %v774
        %v848 = vadd.f32 %v736, %v779
        %v849 = vadd.f32 %v737, %v784
        %v850 = vadd.f32 %v738, %v789
        %v851 = vadd.f32 %v739, %v794
        %v852 = vadd.f32 %v740, %v799
        %v853 = vadd.f32 %v741, %v804
        %v854 = vadd.f32 %v742, %v809
        %v855 = vadd.f32 %v743, %v814
        %v856 = vadd.f32 %v744, %v819
        %v857 = vadd.f32 %v745, %v824
        %v858 = vadd.f32 %v746, %v829
        %v859 = vadd.f32 %v747, %v834
        %v860 = vadd.f32 %v748, %v839
        %v861 = vadd.f32 %v749, %v844
        %v862 = vmax.f32 %v846, 0.0
        %v863 = vmax.f32 %v847, 0.0
        %v864 = vmax.f32 %v848, 0.0
        %v865 = vmax.f32 %v849, 0.0
        %v866 = vmax.f32 %v850, 0.0
        %v867 = vmax.f32 %v851, 0.0
        %v868 = vmax.f32 %v852, 0.0
        %v869 = vmax.f32 %v853, 0.0
        %v870 = vmax.f32 %v854, 0.0
        %v871 = vmax.f32 %v855, 0.0
        %v872 = vmax.f32 %v856, 0.0
        %v873 = vmax.f32 %v857, 0.0
        %v874 = vmax.f32 %v858, 0.0
        %v875 = vmax.f32 %v859, 0.0
        %v876 = vmax.f32 %v860, 0.0
        %v877 = vmax.f32 %v861, 0.0
        %878 = vadd.xlane.f32.xlu0 %v862
        %v879 = vpop.xlane.xlu0 %878
        %880 = vadd.xlane.f32.xlu0 %v863
        %v881 = vpop.xlane.xlu0 %880
        %882 = vadd.xlane.f32.xlu0 %v864
        %v883 = vpop.xlane.xlu0 %882
        %884 = vadd.xlane.f32.xlu0 %v865
        %v885 = vpop.xlane.xlu0 %884
        %886 = vadd.xlane.f32.xlu0 %v866
        %v887 = vpop.xlane.xlu0 %886
        %888 = vadd.xlane.f32.xlu0 %v867
        %v889 = vpop.xlane.xlu0 %888
        %890 = vadd.xlane.f32.xlu0 %v868
        %v891 = vpop.xlane.xlu0 %890
        %892 = vadd.xlane.f32.xlu0 %v869
        %v893 = vpop.xlane.xlu0 %892
        %894 = vadd.xlane.f32.xlu0 %v870
        %v895 = vpop.xlane.xlu0 %894
        %896 = vadd.xlane.f32.xlu0 %v871
        %v897 = vpop.xlane.xlu0 %896
        %898 = vadd.xlane.f32.xlu0 %v872
        %v899 = vpop.xlane.xlu0 %898
        %900 = vadd.xlane.f32.xlu0 %v873
        %v901 = vpop.xlane.xlu0 %900
        %902 = vadd.xlane.f32.xlu0 %v874
        %v903 = vpop.xlane.xlu0 %902
        %904 = vadd.xlane.f32.xlu0 %v875
        %v905 = vpop.xlane.xlu0 %904
        %906 = vadd.xlane.f32.xlu0 %v876
        %v907 = vpop.xlane.xlu0 %906
        %908 = vadd.xlane.f32.xlu0 %v877
        %v909 = vpop.xlane.xlu0 %908
        %p910 = scmp.eq.s32.totalorder %s23, 0
        // Predicated region
        $region131: #{tpu_custom_call.1} parent=121 // pred_check
          %p911 = pneg %p910
        $region132: #{tpu_custom_call.1} parent=121 // pred_check_branch
          %913 = sbr.rel (%p911) target = $region134
        $region133: #{tpu_custom_call.1} parent=121 // pred_region
          %vm914 = vcmask 7168
          %915 = vst.msk [vmem:[#allocation2] sm:$0xff] %vm914, %v879
          %916 = vst.msk [vmem:[#allocation2 + $0x8] sm:$0xff] %vm914, %v881
          %917 = vst.msk [vmem:[#allocation2 + $0x10] sm:$0xff] %vm914, %v883
          %918 = vst.msk [vmem:[#allocation2 + $0x18] sm:$0xff] %vm914, %v885
          %919 = vst.msk [vmem:[#allocation2 + $0x20] sm:$0xff] %vm914, %v887
          %920 = vst.msk [vmem:[#allocation2 + $0x28] sm:$0xff] %vm914, %v889
          %921 = vst.msk [vmem:[#allocation2 + $0x30] sm:$0xff] %vm914, %v891
          %922 = vst.msk [vmem:[#allocation2 + $0x38] sm:$0xff] %vm914, %v893
          %923 = vst.msk [vmem:[#allocation2 + $0x40] sm:$0xff] %vm914, %v895
          %924 = vst.msk [vmem:[#allocation2 + $0x48] sm:$0xff] %vm914, %v897
          %925 = vst.msk [vmem:[#allocation2 + $0x50] sm:$0xff] %vm914, %v899
          %926 = vst.msk [vmem:[#allocation2 + $0x58] sm:$0xff] %vm914, %v901
          %927 = vst.msk [vmem:[#allocation2 + $0x60] sm:$0xff] %vm914, %v903
          %928 = vst.msk [vmem:[#allocation2 + $0x68] sm:$0xff] %vm914, %v905
          %929 = vst.msk [vmem:[#allocation2 + $0x70] sm:$0xff] %vm914, %v907
          %930 = vst.msk [vmem:[#allocation2 + $0x78] sm:$0xff] %vm914, %v909
        $region134: #{tpu_custom_call.1} parent=121 // pred_fallthru
          _
        %p931 = scmp.gt.s32.totalorder %s23, 0
        // Predicated region
        $region135: #{tpu_custom_call.1} parent=121 // pred_check
          %p932 = pneg %p931
        $region136: #{tpu_custom_call.1} parent=121 // pred_check_branch
          %934 = sbr.rel (%p932) target = $region138
        $region137: #{tpu_custom_call.1} parent=121 // pred_region
          %v935 = vld [vmem:[#allocation2] sm:$0xff]
          %v936 = vld [vmem:[#allocation2 + $0x8] sm:$0xff]
          %v937 = vld [vmem:[#allocation2 + $0x10] sm:$0xff]
          %v938 = vld [vmem:[#allocation2 + $0x18] sm:$0xff]
          %v939 = vld [vmem:[#allocation2 + $0x20] sm:$0xff]
          %v940 = vld [vmem:[#allocation2 + $0x28] sm:$0xff]
          %v941 = vld [vmem:[#allocation2 + $0x30] sm:$0xff]
          %v942 = vld [vmem:[#allocation2 + $0x38] sm:$0xff]
          %v943 = vld [vmem:[#allocation2 + $0x40] sm:$0xff]
          %v944 = vld [vmem:[#allocation2 + $0x48] sm:$0xff]
          %v945 = vld [vmem:[#allocation2 + $0x50] sm:$0xff]
          %v946 = vld [vmem:[#allocation2 + $0x58] sm:$0xff]
          %v947 = vld [vmem:[#allocation2 + $0x60] sm:$0xff]
          %v948 = vld [vmem:[#allocation2 + $0x68] sm:$0xff]
          %v949 = vld [vmem:[#allocation2 + $0x70] sm:$0xff]
          %v950 = vld [vmem:[#allocation2 + $0x78] sm:$0xff]
          %v951 = vadd.f32 %v935, %v879
          %v952 = vadd.f32 %v936, %v881
          %v953 = vadd.f32 %v937, %v883
          %v954 = vadd.f32 %v938, %v885
          %v955 = vadd.f32 %v939, %v887
          %v956 = vadd.f32 %v940, %v889
          %v957 = vadd.f32 %v941, %v891
          %v958 = vadd.f32 %v942, %v893
          %v959 = vadd.f32 %v943, %v895
          %v960 = vadd.f32 %v944, %v897
          %v961 = vadd.f32 %v945, %v899
          %v962 = vadd.f32 %v946, %v901
          %v963 = vadd.f32 %v947, %v903
          %v964 = vadd.f32 %v948, %v905
          %v965 = vadd.f32 %v949, %v907
          %v966 = vadd.f32 %v950, %v909
          %vm967 = vcmask 7168
          %968 = vst.msk [vmem:[#allocation2] sm:$0xff] %vm967, %v951
          %969 = vst.msk [vmem:[#allocation2 + $0x8] sm:$0xff] %vm967, %v952
          %970 = vst.msk [vmem:[#allocation2 + $0x10] sm:$0xff] %vm967, %v953
          %971 = vst.msk [vmem:[#allocation2 + $0x18] sm:$0xff] %vm967, %v954
          %972 = vst.msk [vmem:[#allocation2 + $0x20] sm:$0xff] %vm967, %v955
          %973 = vst.msk [vmem:[#allocation2 + $0x28] sm:$0xff] %vm967, %v956
          %974 = vst.msk [vmem:[#allocation2 + $0x30] sm:$0xff] %vm967, %v957
          %975 = vst.msk [vmem:[#allocation2 + $0x38] sm:$0xff] %vm967, %v958
          %976 = vst.msk [vmem:[#allocation2 + $0x40] sm:$0xff] %vm967, %v959
          %977 = vst.msk [vmem:[#allocation2 + $0x48] sm:$0xff] %vm967, %v960
          %978 = vst.msk [vmem:[#allocation2 + $0x50] sm:$0xff] %vm967, %v961
          %979 = vst.msk [vmem:[#allocation2 + $0x58] sm:$0xff] %vm967, %v962
          %980 = vst.msk [vmem:[#allocation2 + $0x60] sm:$0xff] %vm967, %v963
          %981 = vst.msk [vmem:[#allocation2 + $0x68] sm:$0xff] %vm967, %v964
          %982 = vst.msk [vmem:[#allocation2 + $0x70] sm:$0xff] %vm967, %v965
          %983 = vst.msk [vmem:[#allocation2 + $0x78] sm:$0xff] %vm967, %v966
        $region138: #{tpu_custom_call.1} parent=121 // pred_fallthru
          _
        %p984 = scmp.eq.s32.totalorder %s23, 1
        // Predicated region
        $region139: #{tpu_custom_call.1} parent=121 // pred_check
          %p985 = pneg %p984
        $region140: #{tpu_custom_call.1} parent=121 // pred_check_branch
          %987 = sbr.rel (%p985) target = $region142
        $region141: #{tpu_custom_call.1} parent=121 // pred_region
          %v988 = vld [vmem:[#allocation2] sm:$0xff]
          %v989 = vld [vmem:[#allocation2 + $0x8] sm:$0xff]
          %v990 = vld [vmem:[#allocation2 + $0x10] sm:$0xff]
          %v991 = vld [vmem:[#allocation2 + $0x18] sm:$0xff]
          %v992 = vld [vmem:[#allocation2 + $0x20] sm:$0xff]
          %v993 = vld [vmem:[#allocation2 + $0x28] sm:$0xff]
          %v994 = vld [vmem:[#allocation2 + $0x30] sm:$0xff]
          %v995 = vld [vmem:[#allocation2 + $0x38] sm:$0xff]
          %v996 = vld [vmem:[#allocation2 + $0x40] sm:$0xff]
          %v997 = vld [vmem:[#allocation2 + $0x48] sm:$0xff]
          %v998 = vld [vmem:[#allocation2 + $0x50] sm:$0xff]
          %v999 = vld [vmem:[#allocation2 + $0x58] sm:$0xff]
          %v1000 = vld [vmem:[#allocation2 + $0x60] sm:$0xff]
          %v1001 = vld [vmem:[#allocation2 + $0x68] sm:$0xff]
          %v1002 = vld [vmem:[#allocation2 + $0x70] sm:$0xff]
          %v1003 = vld [vmem:[#allocation2 + $0x78] sm:$0xff]
          %v1004 = vmul.f32 %v988, 0.00390625
          %v1005 = vmul.f32 %v989, 0.00390625
          %v1006 = vmul.f32 %v990, 0.00390625
          %v1007 = vmul.f32 %v991, 0.00390625
          %v1008 = vmul.f32 %v992, 0.00390625
          %v1009 = vmul.f32 %v993, 0.00390625
          %v1010 = vmul.f32 %v994, 0.00390625
          %v1011 = vmul.f32 %v995, 0.00390625
          %v1012 = vmul.f32 %v996, 0.00390625
          %v1013 = vmul.f32 %v997, 0.00390625
          %v1014 = vmul.f32 %v998, 0.00390625
          %v1015 = vmul.f32 %v999, 0.00390625
          %v1016 = vmul.f32 %v1000, 0.00390625
          %v1017 = vmul.f32 %v1001, 0.00390625
          %v1018 = vmul.f32 %v1002, 0.00390625
          %v1019 = vmul.f32 %v1003, 0.00390625
          %v1020 = vld [vmem:[%s5] sm:$0xff]
          %v1021 = vld [vmem:[%s5 + $0x8] sm:$0xff]
          %v1022 = vld [vmem:[%s5 + $0x10] sm:$0xff]
          %v1023 = vld [vmem:[%s5 + $0x18] sm:$0xff]
          %1024 = vmatpush.msra.mxu0 %v1019
          %1025 = vmatpush.msra.mxu0 %v1018
          %1026 = vmatpush.msra.mxu0 %v1017
          %1027 = vmatpush.msra.mxu0 %v1016
          %1028 = vmatpush.msra.mxu0 %v1015
          %1029 = vmatpush.msra.mxu0 %v1014
          %1030 = vmatpush.msra.mxu0 %v1013
          %1031 = vmatpush.msra.mxu0 %v1012
          %1032 = vmatpush.msra.mxu0 %v1011
          %1033 = vmatpush.msra.mxu0 %v1010
          %1034 = vmatpush.msra.mxu0 %v1009
          %1035 = vmatpush.msra.mxu0 %v1008
          %1036 = vmatpush.msra.mxu0 %v1007
          %1037 = vmatpush.msra.mxu0 %v1006
          %1038 = vmatpush.msra.mxu0 %v1005
          %1039 = vmatpush.msra.mxu0 %v1004
          %1040 = vmatmul.f32.gmra.mxu0 %v1020
          %v1041 = vpop.f32.mrf.mxu0
          %v1042 = vadd.f32 0.0, %v1041
          %1043 = vmatmul.f32.gmra.mxu0 %v1021
          %v1044 = vpop.f32.mrf.mxu0
          %v1045 = vadd.f32 0.0, %v1044
          %1046 = vmatmul.f32.gmra.mxu0 %v1022
          %v1047 = vpop.f32.mrf.mxu0
          %v1048 = vadd.f32 0.0, %v1047
          %1049 = vmatmul.f32.gmra.mxu0 %v1023
          %v1050 = vpop.f32.mrf.mxu0
          %v1051 = vadd.f32 0.0, %v1050
          %1052 = vdwg.mxu0
          %v1053 = vmax.f32 %v1042, 0.0
          %v1054 = vmax.f32 %v1045, 0.0
          %v1055 = vmax.f32 %v1048, 0.0
          %v1056 = vmax.f32 %v1051, 0.0
          %v1057 = vld [vmem:[%s6] sm:$0xff]
          %v1058 = vld [vmem:[%s6 + $0x8] sm:$0xff]
          %v1059 = vld [vmem:[%s6 + $0x10] sm:$0xff]
          %v1060 = vld [vmem:[%s6 + $0x18] sm:$0xff]
          %v1061 = vld [vmem:[%s6 + $0x20] sm:$0xff]
          %v1062 = vld [vmem:[%s6 + $0x28] sm:$0xff]
          %v1063 = vld [vmem:[%s6 + $0x30] sm:$0xff]
          %v1064 = vld [vmem:[%s6 + $0x38] sm:$0xff]
          %v1065 = vld [vmem:[%s6 + $0x40] sm:$0xff]
          %v1066 = vld [vmem:[%s6 + $0x48] sm:$0xff]
          %v1067 = vld [vmem:[%s6 + $0x50] sm:$0xff]
          %v1068 = vld [vmem:[%s6 + $0x58] sm:$0xff]
          %v1069 = vld [vmem:[%s6 + $0x60] sm:$0xff]
          %v1070 = vld [vmem:[%s6 + $0x68] sm:$0xff]
          %v1071 = vld [vmem:[%s6 + $0x70] sm:$0xff]
          %v1072 = vld [vmem:[%s6 + $0x78] sm:$0xff]
          %vm1073 = vcmask 261120
          %v1075 = vsel %vm1073, %v1057, 0
          %v1078 = vsel %vm1073, %v1058, 0
          %v1081 = vsel %vm1073, %v1059, 0
          %v1084 = vsel %vm1073, %v1060, 0
          %v1087 = vsel %vm1073, %v1061, 0
          %v1090 = vsel %vm1073, %v1062, 0
          %v1093 = vsel %vm1073, %v1063, 0
          %v1096 = vsel %vm1073, %v1064, 0
          %v1099 = vsel %vm1073, %v1065, 0
          %v1102 = vsel %vm1073, %v1066, 0
          %v1105 = vsel %vm1073, %v1067, 0
          %v1108 = vsel %vm1073, %v1068, 0
          %v1111 = vsel %vm1073, %v1069, 0
          %v1114 = vsel %vm1073, %v1070, 0
          %v1117 = vsel %vm1073, %v1071, 0
          %v1120 = vsel %vm1073, %v1072, 0
          %1122 = vmatpush.msra.mxu0 0.0
          %1123 = vmatpush.msra.mxu0 0.0
          %1124 = vmatpush.msra.mxu0 0.0
          %1125 = vmatpush.msra.mxu0 0.0
          %1126 = vmatpush.msra.mxu0 0.0
          %1127 = vmatpush.msra.mxu0 0.0
          %1128 = vmatpush.msra.mxu0 0.0
          %1129 = vmatpush.msra.mxu0 0.0
          %1130 = vmatpush.msra.mxu0 0.0
          %1131 = vmatpush.msra.mxu0 0.0
          %1132 = vmatpush.msra.mxu0 0.0
          %1133 = vmatpush.msra.mxu0 0.0
          %1134 = vmatpush.msra.mxu0 %v1056
          %1135 = vmatpush.msra.mxu0 %v1055
          %1136 = vmatpush.msra.mxu0 %v1054
          %1137 = vmatpush.msra.mxu0 %v1053
          %1138 = vmatmul.f32.gmra.mxu0 %v1075
          %v1139 = vpop.f32.mrf.mxu0
          %v1140 = vadd.f32 0.0, %v1139
          %1141 = vmatmul.f32.gmra.mxu0 %v1078
          %v1142 = vpop.f32.mrf.mxu0
          %v1143 = vadd.f32 0.0, %v1142
          %1144 = vmatmul.f32.gmra.mxu0 %v1081
          %v1145 = vpop.f32.mrf.mxu0
          %v1146 = vadd.f32 0.0, %v1145
          %1147 = vmatmul.f32.gmra.mxu0 %v1084
          %v1148 = vpop.f32.mrf.mxu0
          %v1149 = vadd.f32 0.0, %v1148
          %1150 = vmatmul.f32.gmra.mxu0 %v1087
          %v1151 = vpop.f32.mrf.mxu0
          %v1152 = vadd.f32 0.0, %v1151
          %1153 = vmatmul.f32.gmra.mxu0 %v1090
          %v1154 = vpop.f32.mrf.mxu0
          %v1155 = vadd.f32 0.0, %v1154
          %1156 = vmatmul.f32.gmra.mxu0 %v1093
          %v1157 = vpop.f32.mrf.mxu0
          %v1158 = vadd.f32 0.0, %v1157
          %1159 = vmatmul.f32.gmra.mxu0 %v1096
          %v1160 = vpop.f32.mrf.mxu0
          %v1161 = vadd.f32 0.0, %v1160
          %1162 = vmatmul.f32.gmra.mxu0 %v1099
          %v1163 = vpop.f32.mrf.mxu0
          %v1164 = vadd.f32 0.0, %v1163
          %1165 = vmatmul.f32.gmra.mxu0 %v1102
          %v1166 = vpop.f32.mrf.mxu0
          %v1167 = vadd.f32 0.0, %v1166
          %1168 = vmatmul.f32.gmra.mxu0 %v1105
          %v1169 = vpop.f32.mrf.mxu0
          %v1170 = vadd.f32 0.0, %v1169
          %1171 = vmatmul.f32.gmra.mxu0 %v1108
          %v1172 = vpop.f32.mrf.mxu0
          %v1173 = vadd.f32 0.0, %v1172
          %1174 = vmatmul.f32.gmra.mxu0 %v1111
          %v1175 = vpop.f32.mrf.mxu0
          %v1176 = vadd.f32 0.0, %v1175
          %1177 = vmatmul.f32.gmra.mxu0 %v1114
          %v1178 = vpop.f32.mrf.mxu0
          %v1179 = vadd.f32 0.0, %v1178
          %1180 = vmatmul.f32.gmra.mxu0 %v1117
          %v1181 = vpop.f32.mrf.mxu0
          %v1182 = vadd.f32 0.0, %v1181
          %1183 = vmatmul.f32.gmra.mxu0 %v1120
          %v1184 = vpop.f32.mrf.mxu0
          %v1185 = vadd.f32 0.0, %v1184
          %1186 = vdwg.mxu0
          %v1187 = vxor.u32 %v1140, 2147483648
          %v1188 = vxor.u32 %v1143, 2147483648
          %v1189 = vxor.u32 %v1146, 2147483648
          %v1190 = vxor.u32 %v1149, 2147483648
          %v1191 = vxor.u32 %v1152, 2147483648
          %v1192 = vxor.u32 %v1155, 2147483648
          %v1193 = vxor.u32 %v1158, 2147483648
          %v1194 = vxor.u32 %v1161, 2147483648
          %v1195 = vxor.u32 %v1164, 2147483648
          %v1196 = vxor.u32 %v1167, 2147483648
          %v1197 = vxor.u32 %v1170, 2147483648
          %v1198 = vxor.u32 %v1173, 2147483648
          %v1199 = vxor.u32 %v1176, 2147483648
          %v1200 = vxor.u32 %v1179, 2147483648
          %v1201 = vxor.u32 %v1182, 2147483648
          %v1202 = vxor.u32 %v1185, 2147483648
          %v1203 = vmul.f32 %v1187, 1.442695
          %v1204 = vpow.pop %v1203
          %v1205 = vmul.f32 %v1188, 1.442695
          %v1206 = vpow.pop %v1205
          %v1207 = vmul.f32 %v1189, 1.442695
          %v1208 = vpow.pop %v1207
          %v1209 = vmul.f32 %v1190, 1.442695
          %v1210 = vpow.pop %v1209
          %v1211 = vmul.f32 %v1191, 1.442695
          %v1212 = vpow.pop %v1211
          %v1213 = vmul.f32 %v1192, 1.442695
          %v1214 = vpow.pop %v1213
          %v1215 = vmul.f32 %v1193, 1.442695
          %v1216 = vpow.pop %v1215
          %v1217 = vmul.f32 %v1194, 1.442695
          %v1218 = vpow.pop %v1217
          %v1219 = vmul.f32 %v1195, 1.442695
          %v1220 = vpow.pop %v1219
          %v1221 = vmul.f32 %v1196, 1.442695
          %v1222 = vpow.pop %v1221
          %v1223 = vmul.f32 %v1197, 1.442695
          %v1224 = vpow.pop %v1223
          %v1225 = vmul.f32 %v1198, 1.442695
          %v1226 = vpow.pop %v1225
          %v1227 = vmul.f32 %v1199, 1.442695
          %v1228 = vpow.pop %v1227
          %v1229 = vmul.f32 %v1200, 1.442695
          %v1230 = vpow.pop %v1229
          %v1231 = vmul.f32 %v1201, 1.442695
          %v1232 = vpow.pop %v1231
          %v1233 = vmul.f32 %v1202, 1.442695
          %v1234 = vpow.pop %v1233
          %v1235 = vadd.f32 %v1204, 1.0
          %v1236 = vadd.f32 %v1206, 1.0
          %v1237 = vadd.f32 %v1208, 1.0
          %v1238 = vadd.f32 %v1210, 1.0
          %v1239 = vadd.f32 %v1212, 1.0
          %v1240 = vadd.f32 %v1214, 1.0
          %v1241 = vadd.f32 %v1216, 1.0
          %v1242 = vadd.f32 %v1218, 1.0
          %v1243 = vadd.f32 %v1220, 1.0
          %v1244 = vadd.f32 %v1222, 1.0
          %v1245 = vadd.f32 %v1224, 1.0
          %v1246 = vadd.f32 %v1226, 1.0
          %v1247 = vadd.f32 %v1228, 1.0
          %v1248 = vadd.f32 %v1230, 1.0
          %v1249 = vadd.f32 %v1232, 1.0
          %v1250 = vadd.f32 %v1234, 1.0
          %v1251 = vrcp.pop %v1235
          %v1252 = vmul.f32 %v1235, %v1251
          %v1253 = vsub.f32 1.0, %v1252
          %v1254 = vmul.f32 %v1251, %v1253
          %v1255 = vadd.f32 %v1251, %v1254
          %vm1256 = vweird.f32 %v1235
          %vm1257 = vweird.f32 %v1251
          %vm1258 = vmor %vm1256, %vm1257
          %v1259 = vsel %vm1258, %v1251, %v1255
          %v1260 = vand.u32 2147483647, %v1235
          %vm1261 = vcmp.eq.f32.partialorder %v1260, 8.507059e+37
          %v1262 = vand.u32 %v1235, 2147483648
          %v1263 = vor.u32 1.1754944e-38, %v1262
          %v1264 = vsel %vm1261, %v1263, %v1259
          %v1265 = vmul.f32 1.0, %v1264
          %v1266 = vrcp.pop %v1236
          %v1267 = vmul.f32 %v1236, %v1266
          %v1268 = vsub.f32 1.0, %v1267
          %v1269 = vmul.f32 %v1266, %v1268
          %v1270 = vadd.f32 %v1266, %v1269
          %vm1271 = vweird.f32 %v1236
          %vm1272 = vweird.f32 %v1266
          %vm1273 = vmor %vm1271, %vm1272
          %v1274 = vsel %vm1273, %v1266, %v1270
          %v1275 = vand.u32 2147483647, %v1236
          %vm1276 = vcmp.eq.f32.partialorder %v1275, 8.507059e+37
          %v1277 = vand.u32 %v1236, 2147483648
          %v1278 = vor.u32 1.1754944e-38, %v1277
          %v1279 = vsel %vm1276, %v1278, %v1274
          %v1280 = vmul.f32 1.0, %v1279
          %v1281 = vrcp.pop %v1237
          %v1282 = vmul.f32 %v1237, %v1281
          %v1283 = vsub.f32 1.0, %v1282
          %v1284 = vmul.f32 %v1281, %v1283
          %v1285 = vadd.f32 %v1281, %v1284
          %vm1286 = vweird.f32 %v1237
          %vm1287 = vweird.f32 %v1281
          %vm1288 = vmor %vm1286, %vm1287
          %v1289 = vsel %vm1288, %v1281, %v1285
          %v1290 = vand.u32 2147483647, %v1237
          %vm1291 = vcmp.eq.f32.partialorder %v1290, 8.507059e+37
          %v1292 = vand.u32 %v1237, 2147483648
          %v1293 = vor.u32 1.1754944e-38, %v1292
          %v1294 = vsel %vm1291, %v1293, %v1289
          %v1295 = vmul.f32 1.0, %v1294
          %v1296 = vrcp.pop %v1238
          %v1297 = vmul.f32 %v1238, %v1296
          %v1298 = vsub.f32 1.0, %v1297
          %v1299 = vmul.f32 %v1296, %v1298
          %v1300 = vadd.f32 %v1296, %v1299
          %vm1301 = vweird.f32 %v1238
          %vm1302 = vweird.f32 %v1296
          %vm1303 = vmor %vm1301, %vm1302
          %v1304 = vsel %vm1303, %v1296, %v1300
          %v1305 = vand.u32 2147483647, %v1238
          %vm1306 = vcmp.eq.f32.partialorder %v1305, 8.507059e+37
          %v1307 = vand.u32 %v1238, 2147483648
          %v1308 = vor.u32 1.1754944e-38, %v1307
          %v1309 = vsel %vm1306, %v1308, %v1304
          %v1310 = vmul.f32 1.0, %v1309
          %v1311 = vrcp.pop %v1239
          %v1312 = vmul.f32 %v1239, %v1311
          %v1313 = vsub.f32 1.0, %v1312
          %v1314 = vmul.f32 %v1311, %v1313
          %v1315 = vadd.f32 %v1311, %v1314
          %vm1316 = vweird.f32 %v1239
          %vm1317 = vweird.f32 %v1311
          %vm1318 = vmor %vm1316, %vm1317
          %v1319 = vsel %vm1318, %v1311, %v1315
          %v1320 = vand.u32 2147483647, %v1239
          %vm1321 = vcmp.eq.f32.partialorder %v1320, 8.507059e+37
          %v1322 = vand.u32 %v1239, 2147483648
          %v1323 = vor.u32 1.1754944e-38, %v1322
          %v1324 = vsel %vm1321, %v1323, %v1319
          %v1325 = vmul.f32 1.0, %v1324
          %v1326 = vrcp.pop %v1240
          %v1327 = vmul.f32 %v1240, %v1326
          %v1328 = vsub.f32 1.0, %v1327
          %v1329 = vmul.f32 %v1326, %v1328
          %v1330 = vadd.f32 %v1326, %v1329
          %vm1331 = vweird.f32 %v1240
          %vm1332 = vweird.f32 %v1326
          %vm1333 = vmor %vm1331, %vm1332
          %v1334 = vsel %vm1333, %v1326, %v1330
          %v1335 = vand.u32 2147483647, %v1240
          %vm1336 = vcmp.eq.f32.partialorder %v1335, 8.507059e+37
          %v1337 = vand.u32 %v1240, 2147483648
          %v1338 = vor.u32 1.1754944e-38, %v1337
          %v1339 = vsel %vm1336, %v1338, %v1334
          %v1340 = vmul.f32 1.0, %v1339
          %v1341 = vrcp.pop %v1241
          %v1342 = vmul.f32 %v1241, %v1341
          %v1343 = vsub.f32 1.0, %v1342
          %v1344 = vmul.f32 %v1341, %v1343
          %v1345 = vadd.f32 %v1341, %v1344
          %vm1346 = vweird.f32 %v1241
          %vm1347 = vweird.f32 %v1341
          %vm1348 = vmor %vm1346, %vm1347
          %v1349 = vsel %vm1348, %v1341, %v1345
          %v1350 = vand.u32 2147483647, %v1241
          %vm1351 = vcmp.eq.f32.partialorder %v1350, 8.507059e+37
          %v1352 = vand.u32 %v1241, 2147483648
          %v1353 = vor.u32 1.1754944e-38, %v1352
          %v1354 = vsel %vm1351, %v1353, %v1349
          %v1355 = vmul.f32 1.0, %v1354
          %v1356 = vrcp.pop %v1242
          %v1357 = vmul.f32 %v1242, %v1356
          %v1358 = vsub.f32 1.0, %v1357
          %v1359 = vmul.f32 %v1356, %v1358
          %v1360 = vadd.f32 %v1356, %v1359
          %vm1361 = vweird.f32 %v1242
          %vm1362 = vweird.f32 %v1356
          %vm1363 = vmor %vm1361, %vm1362
          %v1364 = vsel %vm1363, %v1356, %v1360
          %v1365 = vand.u32 2147483647, %v1242
          %vm1366 = vcmp.eq.f32.partialorder %v1365, 8.507059e+37
          %v1367 = vand.u32 %v1242, 2147483648
          %v1368 = vor.u32 1.1754944e-38, %v1367
          %v1369 = vsel %vm1366, %v1368, %v1364
          %v1370 = vmul.f32 1.0, %v1369
          %v1371 = vrcp.pop %v1243
          %v1372 = vmul.f32 %v1243, %v1371
          %v1373 = vsub.f32 1.0, %v1372
          %v1374 = vmul.f32 %v1371, %v1373
          %v1375 = vadd.f32 %v1371, %v1374
          %vm1376 = vweird.f32 %v1243
          %vm1377 = vweird.f32 %v1371
          %vm1378 = vmor %vm1376, %vm1377
          %v1379 = vsel %vm1378, %v1371, %v1375
          %v1380 = vand.u32 2147483647, %v1243
          %vm1381 = vcmp.eq.f32.partialorder %v1380, 8.507059e+37
          %v1382 = vand.u32 %v1243, 2147483648
          %v1383 = vor.u32 1.1754944e-38, %v1382
          %v1384 = vsel %vm1381, %v1383, %v1379
          %v1385 = vmul.f32 1.0, %v1384
          %v1386 = vrcp.pop %v1244
          %v1387 = vmul.f32 %v1244, %v1386
          %v1388 = vsub.f32 1.0, %v1387
          %v1389 = vmul.f32 %v1386, %v1388
          %v1390 = vadd.f32 %v1386, %v1389
          %vm1391 = vweird.f32 %v1244
          %vm1392 = vweird.f32 %v1386
          %vm1393 = vmor %vm1391, %vm1392
          %v1394 = vsel %vm1393, %v1386, %v1390
          %v1395 = vand.u32 2147483647, %v1244
          %vm1396 = vcmp.eq.f32.partialorder %v1395, 8.507059e+37
          %v1397 = vand.u32 %v1244, 2147483648
          %v1398 = vor.u32 1.1754944e-38, %v1397
          %v1399 = vsel %vm1396, %v1398, %v1394
          %v1400 = vmul.f32 1.0, %v1399
          %v1401 = vrcp.pop %v1245
          %v1402 = vmul.f32 %v1245, %v1401
          %v1403 = vsub.f32 1.0, %v1402
          %v1404 = vmul.f32 %v1401, %v1403
          %v1405 = vadd.f32 %v1401, %v1404
          %vm1406 = vweird.f32 %v1245
          %vm1407 = vweird.f32 %v1401
          %vm1408 = vmor %vm1406, %vm1407
          %v1409 = vsel %vm1408, %v1401, %v1405
          %v1410 = vand.u32 2147483647, %v1245
          %vm1411 = vcmp.eq.f32.partialorder %v1410, 8.507059e+37
          %v1412 = vand.u32 %v1245, 2147483648
          %v1413 = vor.u32 1.1754944e-38, %v1412
          %v1414 = vsel %vm1411, %v1413, %v1409
          %v1415 = vmul.f32 1.0, %v1414
          %v1416 = vrcp.pop %v1246
          %v1417 = vmul.f32 %v1246, %v1416
          %v1418 = vsub.f32 1.0, %v1417
          %v1419 = vmul.f32 %v1416, %v1418
          %v1420 = vadd.f32 %v1416, %v1419
          %vm1421 = vweird.f32 %v1246
          %vm1422 = vweird.f32 %v1416
          %vm1423 = vmor %vm1421, %vm1422
          %v1424 = vsel %vm1423, %v1416, %v1420
          %v1425 = vand.u32 2147483647, %v1246
          %vm1426 = vcmp.eq.f32.partialorder %v1425, 8.507059e+37
          %v1427 = vand.u32 %v1246, 2147483648
          %v1428 = vor.u32 1.1754944e-38, %v1427
          %v1429 = vsel %vm1426, %v1428, %v1424
          %v1430 = vmul.f32 1.0, %v1429
          %v1431 = vrcp.pop %v1247
          %v1432 = vmul.f32 %v1247, %v1431
          %v1433 = vsub.f32 1.0, %v1432
          %v1434 = vmul.f32 %v1431, %v1433
          %v1435 = vadd.f32 %v1431, %v1434
          %vm1436 = vweird.f32 %v1247
          %vm1437 = vweird.f32 %v1431
          %vm1438 = vmor %vm1436, %vm1437
          %v1439 = vsel %vm1438, %v1431, %v1435
          %v1440 = vand.u32 2147483647, %v1247
          %vm1441 = vcmp.eq.f32.partialorder %v1440, 8.507059e+37
          %v1442 = vand.u32 %v1247, 2147483648
          %v1443 = vor.u32 1.1754944e-38, %v1442
          %v1444 = vsel %vm1441, %v1443, %v1439
          %v1445 = vmul.f32 1.0, %v1444
          %v1446 = vrcp.pop %v1248
          %v1447 = vmul.f32 %v1248, %v1446
          %v1448 = vsub.f32 1.0, %v1447
          %v1449 = vmul.f32 %v1446, %v1448
          %v1450 = vadd.f32 %v1446, %v1449
          %vm1451 = vweird.f32 %v1248
          %vm1452 = vweird.f32 %v1446
          %vm1453 = vmor %vm1451, %vm1452
          %v1454 = vsel %vm1453, %v1446, %v1450
          %v1455 = vand.u32 2147483647, %v1248
          %vm1456 = vcmp.eq.f32.partialorder %v1455, 8.507059e+37
          %v1457 = vand.u32 %v1248, 2147483648
          %v1458 = vor.u32 1.1754944e-38, %v1457
          %v1459 = vsel %vm1456, %v1458, %v1454
          %v1460 = vmul.f32 1.0, %v1459
          %v1461 = vrcp.pop %v1249
          %v1462 = vmul.f32 %v1249, %v1461
          %v1463 = vsub.f32 1.0, %v1462
          %v1464 = vmul.f32 %v1461, %v1463
          %v1465 = vadd.f32 %v1461, %v1464
          %vm1466 = vweird.f32 %v1249
          %vm1467 = vweird.f32 %v1461
          %vm1468 = vmor %vm1466, %vm1467
          %v1469 = vsel %vm1468, %v1461, %v1465
          %v1470 = vand.u32 2147483647, %v1249
          %vm1471 = vcmp.eq.f32.partialorder %v1470, 8.507059e+37
          %v1472 = vand.u32 %v1249, 2147483648
          %v1473 = vor.u32 1.1754944e-38, %v1472
          %v1474 = vsel %vm1471, %v1473, %v1469
          %v1475 = vmul.f32 1.0, %v1474
          %v1476 = vrcp.pop %v1250
          %v1477 = vmul.f32 %v1250, %v1476
          %v1478 = vsub.f32 1.0, %v1477
          %v1479 = vmul.f32 %v1476, %v1478
          %v1480 = vadd.f32 %v1476, %v1479
          %vm1481 = vweird.f32 %v1250
          %vm1482 = vweird.f32 %v1476
          %vm1483 = vmor %vm1481, %vm1482
          %v1484 = vsel %vm1483, %v1476, %v1480
          %v1485 = vand.u32 2147483647, %v1250
          %vm1486 = vcmp.eq.f32.partialorder %v1485, 8.507059e+37
          %v1487 = vand.u32 %v1250, 2147483648
          %v1488 = vor.u32 1.1754944e-38, %v1487
          %v1489 = vsel %vm1486, %v1488, %v1484
          %v1490 = vmul.f32 1.0, %v1489
          %v1491 = vadd.f32 %v1265, 1.0
          %v1492 = vadd.f32 %v1280, 1.0
          %v1493 = vadd.f32 %v1295, 1.0
          %v1494 = vadd.f32 %v1310, 1.0
          %v1495 = vadd.f32 %v1325, 1.0
          %v1496 = vadd.f32 %v1340, 1.0
          %v1497 = vadd.f32 %v1355, 1.0
          %v1498 = vadd.f32 %v1370, 1.0
          %v1499 = vadd.f32 %v1385, 1.0
          %v1500 = vadd.f32 %v1400, 1.0
          %v1501 = vadd.f32 %v1415, 1.0
          %v1502 = vadd.f32 %v1430, 1.0
          %v1503 = vadd.f32 %v1445, 1.0
          %v1504 = vadd.f32 %v1460, 1.0
          %v1505 = vadd.f32 %v1475, 1.0
          %v1506 = vadd.f32 %v1490, 1.0
          %vm1507 = vcmask 7168
          %1508 = vst.msk [vmem:[%s460] sm:$0xff] %vm1507, %v1491
          %1509 = vst.msk [vmem:[%s460 + $0x8] sm:$0xff] %vm1507, %v1492
          %1510 = vst.msk [vmem:[%s460 + $0x10] sm:$0xff] %vm1507, %v1493
          %1511 = vst.msk [vmem:[%s460 + $0x18] sm:$0xff] %vm1507, %v1494
          %1512 = vst.msk [vmem:[%s460 + $0x20] sm:$0xff] %vm1507, %v1495
          %1513 = vst.msk [vmem:[%s460 + $0x28] sm:$0xff] %vm1507, %v1496
          %1514 = vst.msk [vmem:[%s460 + $0x30] sm:$0xff] %vm1507, %v1497
          %1515 = vst.msk [vmem:[%s460 + $0x38] sm:$0xff] %vm1507, %v1498
          %1516 = vst.msk [vmem:[%s460 + $0x40] sm:$0xff] %vm1507, %v1499
          %1517 = vst.msk [vmem:[%s460 + $0x48] sm:$0xff] %vm1507, %v1500
          %1518 = vst.msk [vmem:[%s460 + $0x50] sm:$0xff] %vm1507, %v1501
          %1519 = vst.msk [vmem:[%s460 + $0x58] sm:$0xff] %vm1507, %v1502
          %1520 = vst.msk [vmem:[%s460 + $0x60] sm:$0xff] %vm1507, %v1503
          %1521 = vst.msk [vmem:[%s460 + $0x68] sm:$0xff] %vm1507, %v1504
          %1522 = vst.msk [vmem:[%s460 + $0x70] sm:$0xff] %vm1507, %v1505
          %1523 = vst.msk [vmem:[%s460 + $0x78] sm:$0xff] %vm1507, %v1506
        $region142: #{tpu_custom_call.1} parent=121 // pred_fallthru
          _
        %p1524 = scmp.lt.s32.totalorder %s22, 1
        %s1525 = scalar_select %p1524, %s22, 1
        %s1526 = smul.addr %s1525, 16
        %s1527 = smul.addr %s1526, 8
        %s1528 = scalar_lea.vmem %s7, %s1527
        // Predicated region
        $region143: #{tpu_custom_call.1} parent=121 // pred_check
          %p1529 = pneg %p209
        $region144: #{tpu_custom_call.1} parent=121 // pred_check_branch
          %1531 = sbr.rel (%p1529) target = $region146
        $region145: #{tpu_custom_call.1} parent=121 // pred_region
          _
        $region146: #{tpu_custom_call.1} parent=121 // pred_fallthru
          _
      $region122: #{tpu_custom_call.1} parent=5 // pred_fallthru
        _
      %p1532 = scmp.le.s32.totalorder 2, %s13
      // Predicated region
      $region147: #{tpu_custom_call.1} parent=5 // pred_check
        %p1533 = pneg %p1532
      $region148: #{tpu_custom_call.1} parent=5 // pred_check_branch
        %1535 = sbr.rel (%p1533) target = $region150
      $region149: #{tpu_custom_call.1} parent=5 // pred_region
        %s1536 = ssub.s32 %s13, 2
        // Predicated region
        $region151: #{tpu_custom_call.1} parent=149 // pred_check
          %p1537 = pneg %p215
        $region152: #{tpu_custom_call.1} parent=149 // pred_check_branch
          %1539 = sbr.rel (%p1537) target = $region154
        $region153: #{tpu_custom_call.1} parent=149 // pred_region
          %p1540 = scmp.lt.s32.totalorder %s24, 1
          %s1541 = scalar_select %p1540, %s24, 1
          %s1542 = smul.addr %s1541, 16
          %s1543 = smul.addr %s1542, 8
          %s1544 = scalar_lea.vmem %s7, %s1543
        $region154: #{tpu_custom_call.1} parent=149 // pred_fallthru
          _
      $region150: #{tpu_custom_call.1} parent=5 // pred_fallthru
        _
    $region6: #{tpu_custom_call.1} parent=1 // loop_footer
      %s17 = sadd.s32 1, %s13
    $region7: #{tpu_custom_call.1} parent=1 // loop_footer_branch
      %12 = sbr.rel target = $region3
    $region8: #{tpu_custom_call.1} parent=1 // loop_exit
      _

</llo_original>
